<compile_context>
chip_gen: v7x
topology: tpu7x:2x2x1
jax: 0.10.0
libtpu: 0.0.40
codegen_flags: <defaults>
</compile_context>

<pallas_src>
import jax
import jax.numpy as jnp
from jax import lax
from jax.experimental import pallas as pl
from jax.experimental.pallas import tpu as pltpu


# ----------------------------- Pallas kernel ---------------------------------
def lstm_fwd_kernel(
    tok_ref,      # (S*B, 1) int32   tokens, time-major flattened
    table_ref,    # (V, E)   f32     embedding table
    wih0_ref,     # (E, 4H)
    whh0_ref,     # (H, 4H)
    b0_ref,       # (1, 4H)          b_ih0 + b_hh0
    w1c_ref,      # (2H, 4H)         [wih1.T ; whh1.T]
    b1_ref,       # (1, 4H)          b_ih1 + b_hh1
    wfc_ref,      # (H, 3)
    bfc_ref,      # (1, 3)
    out_ref,      # (B, 3)   logits of the last timestep
):
    B = out_ref.shape[0]
    SB = tok_ref.shape[0]
    S = SB // B
    H = whh0_ref.shape[0]
    V = table_ref.shape[0]

    # ---- fused embedding gather via one-hot matmul (MXU-friendly, no dynamic gather) ----
    tok = tok_ref[...]                                               # (S*B, 1) int32
    vocab_ids = lax.broadcasted_iota(jnp.int32, (SB, V), 1)          # (S*B, V)
    onehot = jnp.where(vocab_ids == tok, 1.0, 0.0)                   # (S*B, V) f32
    emb = jnp.dot(onehot, table_ref[...],
                  preferred_element_type=jnp.float32)                # (S*B, E)
    # nn.Dropout(0.8) on the embedding: identity in eval mode.

    # ---- hoisted layer-0 input projection: one matmul for all S timesteps ----
    gx0_all = (
        jnp.dot(emb, wih0_ref[...], preferred_element_type=jnp.float32)
        + b0_ref[...]
    )                                                                # (S*B, 4H)

    whh0 = whh0_ref[...]
    w1c = w1c_ref[...]
    b1 = b1_ref[...]

    def activate(gates):
        # tanh for the g lanes [2H, 3H), sigmoid elsewhere:
        # two full-width EUP passes + one select instead of four narrow 32-lane ops.
        lane = lax.broadcasted_iota(jnp.int32, gates.shape, 1)
        is_g = (lane >= 2 * H) & (lane < 3 * H)
        return jnp.where(is_g, jnp.tanh(gates), jax.nn.sigmoid(gates))

    def cell_update(act, c_prev):
        i = act[:, 0:H]
        f = act[:, H:2 * H]
        g = act[:, 2 * H:3 * H]
        o = act[:, 3 * H:4 * H]
        c_new = f * c_prev + i * g
        h_new = o * jnp.tanh(c_new)
        return h_new, c_new

    z = jnp.zeros((B, H), jnp.float32)
    h0, c0, h1, c1 = z, z, z, z
    # Fully-unrolled recurrence (S is small & static); state stays in vregs.
    for t in range(S):
        # layer 0: only the recurrent matmul is on the serial path
        g0 = gx0_all[t * B:(t + 1) * B, :] + jnp.dot(
            h0, whh0, preferred_element_type=jnp.float32)
        h0, c0 = cell_update(activate(g0), c0)
        # inter-layer dropout(0.5): identity in eval mode
        # layer 1: single fused matmul over lane-concat [h0, h1]
        xh1 = jnp.concatenate([h0, h1], axis=1)                      # (B, 2H)
        g1 = jnp.dot(xh1, w1c, preferred_element_type=jnp.float32) + b1
        h1, c1 = cell_update(activate(g1), c1)

    # final Linear on the last timestep's layer-1 hidden state
    out_ref[...] = (
        jnp.dot(h1, wfc_ref[...], preferred_element_type=jnp.float32)
        + bfc_ref[...]
    )


# ------------------------------ wrapper ---------------------------------------
def lstm_standard_forward(tokens, params):
    """tokens: (seq, batch) int32 -> logits (batch, 3) f32."""
    S, B = tokens.shape
    H = params["whh0"].shape[1]
    E = params["wih0"].shape[1]

    # Tokens flattened time-major so row t*B + b == tokens[t, b].
    tok2d = tokens.reshape(S * B, 1).astype(jnp.int32)

    # Pre-transpose weights; fold bias pairs; concat layer-1 input/recurrent weights.
    table = params["embedding"].astype(jnp.float32)                  # (V, E)
    wih0 = params["wih0"].T                                          # (E, 4H)
    whh0 = params["whh0"].T                                          # (H, 4H)
    b0 = (params["bih0"] + params["bhh0"]).reshape(1, 4 * H)
    w1cat = jnp.concatenate([params["wih1"].T, params["whh1"].T], axis=0)  # (2H, 4H)
    b1 = (params["bih1"] + params["bhh1"]).reshape(1, 4 * H)
    wfc = params["wfc"].T                                            # (H, 3)
    bfc = params["bfc"].reshape(1, 3)

    vmem = pl.BlockSpec(memory_space=pltpu.MemorySpace.VMEM)

    return pl.pallas_call(
        lstm_fwd_kernel,
        out_shape=jax.ShapeDtypeStruct((B, 3), jnp.float32),
        in_specs=[vmem] * 9,
        out_specs=pl.BlockSpec(memory_space=pltpu.MemorySpace.VMEM),
    )(tok2d, table, wih0, whh0, b0, w1cat, b1, wfc, bfc)


# ----------------------- pure-JAX reference (for checking) --------------------
def reference_forward(tokens, params):
    emb = jnp.take(params["embedding"], tokens, axis=0)              # (S, B, E)
    H = params["whh0"].shape[1]
    S, B, _ = emb.shape

    def cell(x, h, c, wih, whh, bih, bhh):
        g = x @ wih.T + h @ whh.T + bih + bhh
        i = jax.nn.sigmoid(g[:, :H])
        f = jax.nn.sigmoid(g[:, H:2 * H])
        gg = jnp.tanh(g[:, 2 * H:3 * H])
        o = jax.nn.sigmoid(g[:, 3 * H:])
        c = f * c + i * gg
        h = o * jnp.tanh(c)
        return h, c

    h0 = c0 = h1 = c1 = jnp.zeros((B, H), jnp.float32)
    for t in range(S):
        h0, c0 = cell(emb[t], h0, c0, params["wih0"], params["whh0"],
                      params["bih0"], params["bhh0"])
        h1, c1 = cell(h0, h1, c1, params["wih1"], params["whh1"],
                      params["bih1"], params["bhh1"])
    return h1 @ params["wfc"].T + params["bfc"]


# ------------------------------ main -------------------------------------------
def init_params(key, vocab_size, embedding_dim, hidden_dim):
    E, H = embedding_dim, hidden_dim
    ks = jax.random.split(key, 12)
    s = 1.0 / jnp.sqrt(H)
    u = lambda k, shape: jax.random.uniform(k, shape, jnp.float32, -s, s)
    return {
        "embedding": jax.random.normal(ks[0], (vocab_size, E), jnp.float32),
        "wih0": u(ks[1], (4 * H, E)),
        "whh0": u(ks[2], (4 * H, H)),
        "bih0": u(ks[3], (4 * H,)),
        "bhh0": u(ks[4], (4 * H,)),
        "wih1": u(ks[5], (4 * H, H)),
        "whh1": u(ks[6], (4 * H, H)),
        "bih1": u(ks[7], (4 * H,)),
        "bhh1": u(ks[8], (4 * H,)),
        "wfc": u(ks[9], (3, H)),
        "bfc": u(ks[10], (3,)),
    }


if __name__ == "__main__":
    vocab_size, embedding_dim, hidden_dim, n_layers = 50, 32, 32, 2
    seq_len, batch = 8, 2

    key = jax.random.PRNGKey(0)
    pkey, tkey = jax.random.split(key)
    params = init_params(pkey, vocab_size, embedding_dim, hidden_dim)
    tokens = jax.random.randint(tkey, (seq_len, batch), 0, vocab_size, jnp.int32)

    logits = lstm_standard_forward(tokens, params)
    logits = jax.block_until_ready(logits)

    ref = reference_forward(tokens, params)
    assert logits.shape == (batch, 3)
    assert jnp.allclose(logits, ref, atol=1e-4, rtol=1e-4), (logits, ref)

    print("KERNEL_OK")
</pallas_src>

<mosaic_0001>
module attributes {stable_mosaic.version = 11 : i64} {
  func.func @lstm_fwd_kernel(%arg0: memref<16x1xi32, #tpu.memory_space<vmem>>, %arg1: memref<50x32xf32, #tpu.memory_space<vmem>>, %arg2: memref<32x128xf32, #tpu.memory_space<vmem>>, %arg3: memref<32x128xf32, #tpu.memory_space<vmem>>, %arg4: memref<1x128xf32, #tpu.memory_space<vmem>>, %arg5: memref<64x128xf32, #tpu.memory_space<vmem>>, %arg6: memref<1x128xf32, #tpu.memory_space<vmem>>, %arg7: memref<32x3xf32, #tpu.memory_space<vmem>>, %arg8: memref<1x3xf32, #tpu.memory_space<vmem>>, %arg9: memref<2x3xf32, #tpu.memory_space<vmem>>) attributes {dimension_semantics = [], scalar_prefetch = 0 : i64, scratch_operands = 0 : i64, tpu.core_type = #tpu.core_type<tc>} {
    %c0 = arith.constant 0 : index
    %c0_0 = arith.constant 0 : index
    %0 = vector.load %arg0[%c0, %c0_0] : memref<16x1xi32, #tpu.memory_space<vmem>>, vector<16x1xi32>
    %1 = tpu.iota {dimensions = array<i32: 1>} : vector<16x50xi32>
    %2 = vector.broadcast %0 : vector<16x1xi32> to vector<16x50xi32>
    %3 = arith.cmpi eq, %1, %2 : vector<16x50xi32>
    %cst = arith.constant 1.000000e+00 : f32
    %cst_1 = arith.constant 0.000000e+00 : f32
    %4 = vector.broadcast %cst : f32 to vector<16x50xf32>
    %5 = vector.broadcast %cst_1 : f32 to vector<16x50xf32>
    %6 = arith.select %3, %4, %5 : vector<16x50xi1>, vector<16x50xf32>
    %c0_2 = arith.constant 0 : index
    %c0_3 = arith.constant 0 : index
    %7 = vector.load %arg1[%c0_2, %c0_3] : memref<50x32xf32, #tpu.memory_space<vmem>>, vector<50x32xf32>
    %cst_4 = arith.constant dense<0.000000e+00> : vector<16x32xf32>
    %8 = tpu.matmul %6, %7, %cst_4 {dimension_numbers = #tpu.dot_dimension_numbers<[1], [0], [0], [1], [0, 0, 1, 1], [], []>} : vector<16x50xf32>, vector<50x32xf32>, vector<16x32xf32> -> vector<16x32xf32>
    %c0_5 = arith.constant 0 : index
    %c0_6 = arith.constant 0 : index
    %9 = vector.load %arg2[%c0_5, %c0_6] : memref<32x128xf32, #tpu.memory_space<vmem>>, vector<32x128xf32>
    %cst_7 = arith.constant dense<0.000000e+00> : vector<16x128xf32>
    %10 = tpu.matmul %8, %9, %cst_7 {dimension_numbers = #tpu.dot_dimension_numbers<[1], [0], [0], [1], [0, 0, 1, 1], [], []>} : vector<16x32xf32>, vector<32x128xf32>, vector<16x128xf32> -> vector<16x128xf32>
    %c0_8 = arith.constant 0 : index
    %c0_9 = arith.constant 0 : index
    %11 = vector.load %arg4[%c0_8, %c0_9] : memref<1x128xf32, #tpu.memory_space<vmem>>, vector<1x128xf32>
    %12 = vector.broadcast %11 : vector<1x128xf32> to vector<16x128xf32>
    %13 = arith.addf %10, %12 : vector<16x128xf32>
    %c0_10 = arith.constant 0 : index
    %c0_11 = arith.constant 0 : index
    %14 = vector.load %arg3[%c0_10, %c0_11] : memref<32x128xf32, #tpu.memory_space<vmem>>, vector<32x128xf32>
    %c0_12 = arith.constant 0 : index
    %c0_13 = arith.constant 0 : index
    %15 = vector.load %arg5[%c0_12, %c0_13] : memref<64x128xf32, #tpu.memory_space<vmem>>, vector<64x128xf32>
    %c0_14 = arith.constant 0 : index
    %c0_15 = arith.constant 0 : index
    %16 = vector.load %arg6[%c0_14, %c0_15] : memref<1x128xf32, #tpu.memory_space<vmem>>, vector<1x128xf32>
    %cst_16 = arith.constant 0.000000e+00 : f32
    %17 = vector.broadcast %cst_16 : f32 to vector<2x32xf32>
    %18 = vector.extract_strided_slice %13 {offsets = [0, 0], sizes = [2, 128], strides = [1, 1]} : vector<16x128xf32> to vector<2x128xf32>
    %cst_17 = arith.constant dense<0.000000e+00> : vector<2x128xf32>
    %19 = tpu.matmul %17, %14, %cst_17 {dimension_numbers = #tpu.dot_dimension_numbers<[1], [0], [0], [1], [0, 0, 1, 1], [], []>} : vector<2x32xf32>, vector<32x128xf32>, vector<2x128xf32> -> vector<2x128xf32>
    %20 = arith.addf %18, %19 : vector<2x128xf32>
    %21 = tpu.iota {dimensions = array<i32: 1>} : vector<2x128xi32>
    %c64_i32 = arith.constant 64 : i32
    %22 = vector.broadcast %c64_i32 : i32 to vector<2x128xi32>
    %23 = arith.cmpi sge, %21, %22 : vector<2x128xi32>
    %c96_i32 = arith.constant 96 : i32
    %24 = vector.broadcast %c96_i32 : i32 to vector<2x128xi32>
    %25 = arith.cmpi slt, %21, %24 : vector<2x128xi32>
    %26 = arith.andi %23, %25 : vector<2x128xi1>
    %27 = math.tanh %20 : vector<2x128xf32>
    %28 = arith.negf %20 : vector<2x128xf32>
    %29 = math.exp %28 : vector<2x128xf32>
    %cst_18 = arith.constant 1.000000e+00 : f32
    %30 = vector.broadcast %cst_18 : f32 to vector<2x128xf32>
    %31 = arith.addf %30, %29 : vector<2x128xf32>
    %32 = arith.divf %30, %31 : vector<2x128xf32>
    %33 = arith.select %26, %27, %32 : vector<2x128xi1>, vector<2x128xf32>
    %34 = vector.extract_strided_slice %33 {offsets = [0, 0], sizes = [2, 32], strides = [1, 1]} : vector<2x128xf32> to vector<2x32xf32>
    %35 = vector.extract_strided_slice %33 {offsets = [0, 32], sizes = [2, 32], strides = [1, 1]} : vector<2x128xf32> to vector<2x32xf32>
    %36 = vector.extract_strided_slice %33 {offsets = [0, 64], sizes = [2, 32], strides = [1, 1]} : vector<2x128xf32> to vector<2x32xf32>
    %37 = vector.extract_strided_slice %33 {offsets = [0, 96], sizes = [2, 32], strides = [1, 1]} : vector<2x128xf32> to vector<2x32xf32>
    %38 = arith.mulf %35, %17 : vector<2x32xf32>
    %39 = arith.mulf %34, %36 : vector<2x32xf32>
    %40 = arith.addf %38, %39 : vector<2x32xf32>
    %41 = math.tanh %40 : vector<2x32xf32>
    %42 = arith.mulf %37, %41 : vector<2x32xf32>
    %43 = tpu.concatenate %42, %17 in 1 : vector<2x32xf32>, vector<2x32xf32> -> vector<2x64xf32>
    %cst_19 = arith.constant dense<0.000000e+00> : vector<2x128xf32>
    %44 = tpu.matmul %43, %15, %cst_19 {dimension_numbers = #tpu.dot_dimension_numbers<[1], [0], [0], [1], [0, 0, 1, 1], [], []>} : vector<2x64xf32>, vector<64x128xf32>, vector<2x128xf32> -> vector<2x128xf32>
    %45 = vector.broadcast %16 : vector<1x128xf32> to vector<2x128xf32>
    %46 = arith.addf %44, %45 : vector<2x128xf32>
    %47 = tpu.iota {dimensions = array<i32: 1>} : vector<2x128xi32>
    %c64_i32_20 = arith.constant 64 : i32
    %48 = vector.broadcast %c64_i32_20 : i32 to vector<2x128xi32>
    %49 = arith.cmpi sge, %47, %48 : vector<2x128xi32>
    %c96_i32_21 = arith.constant 96 : i32
    %50 = vector.broadcast %c96_i32_21 : i32 to vector<2x128xi32>
    %51 = arith.cmpi slt, %47, %50 : vector<2x128xi32>
    %52 = arith.andi %49, %51 : vector<2x128xi1>
    %53 = math.tanh %46 : vector<2x128xf32>
    %54 = arith.negf %46 : vector<2x128xf32>
    %55 = math.exp %54 : vector<2x128xf32>
    %cst_22 = arith.constant 1.000000e+00 : f32
    %56 = vector.broadcast %cst_22 : f32 to vector<2x128xf32>
    %57 = arith.addf %56, %55 : vector<2x128xf32>
    %58 = arith.divf %56, %57 : vector<2x128xf32>
    %59 = arith.select %52, %53, %58 : vector<2x128xi1>, vector<2x128xf32>
    %60 = vector.extract_strided_slice %59 {offsets = [0, 0], sizes = [2, 32], strides = [1, 1]} : vector<2x128xf32> to vector<2x32xf32>
    %61 = vector.extract_strided_slice %59 {offsets = [0, 32], sizes = [2, 32], strides = [1, 1]} : vector<2x128xf32> to vector<2x32xf32>
    %62 = vector.extract_strided_slice %59 {offsets = [0, 64], sizes = [2, 32], strides = [1, 1]} : vector<2x128xf32> to vector<2x32xf32>
    %63 = vector.extract_strided_slice %59 {offsets = [0, 96], sizes = [2, 32], strides = [1, 1]} : vector<2x128xf32> to vector<2x32xf32>
    %64 = arith.mulf %61, %17 : vector<2x32xf32>
    %65 = arith.mulf %60, %62 : vector<2x32xf32>
    %66 = arith.addf %64, %65 : vector<2x32xf32>
    %67 = math.tanh %66 : vector<2x32xf32>
    %68 = arith.mulf %63, %67 : vector<2x32xf32>
    %69 = vector.extract_strided_slice %13 {offsets = [2, 0], sizes = [2, 128], strides = [1, 1]} : vector<16x128xf32> to vector<2x128xf32>
    %cst_23 = arith.constant dense<0.000000e+00> : vector<2x128xf32>
    %70 = tpu.matmul %42, %14, %cst_23 {dimension_numbers = #tpu.dot_dimension_numbers<[1], [0], [0], [1], [0, 0, 1, 1], [], []>} : vector<2x32xf32>, vector<32x128xf32>, vector<2x128xf32> -> vector<2x128xf32>
    %71 = arith.addf %69, %70 : vector<2x128xf32>
    %72 = tpu.iota {dimensions = array<i32: 1>} : vector<2x128xi32>
    %c64_i32_24 = arith.constant 64 : i32
    %73 = vector.broadcast %c64_i32_24 : i32 to vector<2x128xi32>
    %74 = arith.cmpi sge, %72, %73 : vector<2x128xi32>
    %c96_i32_25 = arith.constant 96 : i32
    %75 = vector.broadcast %c96_i32_25 : i32 to vector<2x128xi32>
    %76 = arith.cmpi slt, %72, %75 : vector<2x128xi32>
    %77 = arith.andi %74, %76 : vector<2x128xi1>
    %78 = math.tanh %71 : vector<2x128xf32>
    %79 = arith.negf %71 : vector<2x128xf32>
    %80 = math.exp %79 : vector<2x128xf32>
    %cst_26 = arith.constant 1.000000e+00 : f32
    %81 = vector.broadcast %cst_26 : f32 to vector<2x128xf32>
    %82 = arith.addf %81, %80 : vector<2x128xf32>
    %83 = arith.divf %81, %82 : vector<2x128xf32>
    %84 = arith.select %77, %78, %83 : vector<2x128xi1>, vector<2x128xf32>
    %85 = vector.extract_strided_slice %84 {offsets = [0, 0], sizes = [2, 32], strides = [1, 1]} : vector<2x128xf32> to vector<2x32xf32>
    %86 = vector.extract_strided_slice %84 {offsets = [0, 32], sizes = [2, 32], strides = [1, 1]} : vector<2x128xf32> to vector<2x32xf32>
    %87 = vector.extract_strided_slice %84 {offsets = [0, 64], sizes = [2, 32], strides = [1, 1]} : vector<2x128xf32> to vector<2x32xf32>
    %88 = vector.extract_strided_slice %84 {offsets = [0, 96], sizes = [2, 32], strides = [1, 1]} : vector<2x128xf32> to vector<2x32xf32>
    %89 = arith.mulf %86, %40 : vector<2x32xf32>
    %90 = arith.mulf %85, %87 : vector<2x32xf32>
    %91 = arith.addf %89, %90 : vector<2x32xf32>
    %92 = math.tanh %91 : vector<2x32xf32>
    %93 = arith.mulf %88, %92 : vector<2x32xf32>
    %94 = tpu.concatenate %93, %68 in 1 : vector<2x32xf32>, vector<2x32xf32> -> vector<2x64xf32>
    %cst_27 = arith.constant dense<0.000000e+00> : vector<2x128xf32>
    %95 = tpu.matmul %94, %15, %cst_27 {dimension_numbers = #tpu.dot_dimension_numbers<[1], [0], [0], [1], [0, 0, 1, 1], [], []>} : vector<2x64xf32>, vector<64x128xf32>, vector<2x128xf32> -> vector<2x128xf32>
    %96 = vector.broadcast %16 : vector<1x128xf32> to vector<2x128xf32>
    %97 = arith.addf %95, %96 : vector<2x128xf32>
    %98 = tpu.iota {dimensions = array<i32: 1>} : vector<2x128xi32>
    %c64_i32_28 = arith.constant 64 : i32
    %99 = vector.broadcast %c64_i32_28 : i32 to vector<2x128xi32>
    %100 = arith.cmpi sge, %98, %99 : vector<2x128xi32>
    %c96_i32_29 = arith.constant 96 : i32
    %101 = vector.broadcast %c96_i32_29 : i32 to vector<2x128xi32>
    %102 = arith.cmpi slt, %98, %101 : vector<2x128xi32>
    %103 = arith.andi %100, %102 : vector<2x128xi1>
    %104 = math.tanh %97 : vector<2x128xf32>
    %105 = arith.negf %97 : vector<2x128xf32>
    %106 = math.exp %105 : vector<2x128xf32>
    %cst_30 = arith.constant 1.000000e+00 : f32
    %107 = vector.broadcast %cst_30 : f32 to vector<2x128xf32>
    %108 = arith.addf %107, %106 : vector<2x128xf32>
    %109 = arith.divf %107, %108 : vector<2x128xf32>
    %110 = arith.select %103, %104, %109 : vector<2x128xi1>, vector<2x128xf32>
    %111 = vector.extract_strided_slice %110 {offsets = [0, 0], sizes = [2, 32], strides = [1, 1]} : vector<2x128xf32> to vector<2x32xf32>
    %112 = vector.extract_strided_slice %110 {offsets = [0, 32], sizes = [2, 32], strides = [1, 1]} : vector<2x128xf32> to vector<2x32xf32>
    %113 = vector.extract_strided_slice %110 {offsets = [0, 64], sizes = [2, 32], strides = [1, 1]} : vector<2x128xf32> to vector<2x32xf32>
    %114 = vector.extract_strided_slice %110 {offsets = [0, 96], sizes = [2, 32], strides = [1, 1]} : vector<2x128xf32> to vector<2x32xf32>
    %115 = arith.mulf %112, %66 : vector<2x32xf32>
    %116 = arith.mulf %111, %113 : vector<2x32xf32>
    %117 = arith.addf %115, %116 : vector<2x32xf32>
    %118 = math.tanh %117 : vector<2x32xf32>
    %119 = arith.mulf %114, %118 : vector<2x32xf32>
    %120 = vector.extract_strided_slice %13 {offsets = [4, 0], sizes = [2, 128], strides = [1, 1]} : vector<16x128xf32> to vector<2x128xf32>
    %cst_31 = arith.constant dense<0.000000e+00> : vector<2x128xf32>
    %121 = tpu.matmul %93, %14, %cst_31 {dimension_numbers = #tpu.dot_dimension_numbers<[1], [0], [0], [1], [0, 0, 1, 1], [], []>} : vector<2x32xf32>, vector<32x128xf32>, vector<2x128xf32> -> vector<2x128xf32>
    %122 = arith.addf %120, %121 : vector<2x128xf32>
    %123 = tpu.iota {dimensions = array<i32: 1>} : vector<2x128xi32>
    %c64_i32_32 = arith.constant 64 : i32
    %124 = vector.broadcast %c64_i32_32 : i32 to vector<2x128xi32>
    %125 = arith.cmpi sge, %123, %124 : vector<2x128xi32>
    %c96_i32_33 = arith.constant 96 : i32
    %126 = vector.broadcast %c96_i32_33 : i32 to vector<2x128xi32>
    %127 = arith.cmpi slt, %123, %126 : vector<2x128xi32>
    %128 = arith.andi %125, %127 : vector<2x128xi1>
    %129 = math.tanh %122 : vector<2x128xf32>
    %130 = arith.negf %122 : vector<2x128xf32>
    %131 = math.exp %130 : vector<2x128xf32>
    %cst_34 = arith.constant 1.000000e+00 : f32
    %132 = vector.broadcast %cst_34 : f32 to vector<2x128xf32>
    %133 = arith.addf %132, %131 : vector<2x128xf32>
    %134 = arith.divf %132, %133 : vector<2x128xf32>
    %135 = arith.select %128, %129, %134 : vector<2x128xi1>, vector<2x128xf32>
    %136 = vector.extract_strided_slice %135 {offsets = [0, 0], sizes = [2, 32], strides = [1, 1]} : vector<2x128xf32> to vector<2x32xf32>
    %137 = vector.extract_strided_slice %135 {offsets = [0, 32], sizes = [2, 32], strides = [1, 1]} : vector<2x128xf32> to vector<2x32xf32>
    %138 = vector.extract_strided_slice %135 {offsets = [0, 64], sizes = [2, 32], strides = [1, 1]} : vector<2x128xf32> to vector<2x32xf32>
    %139 = vector.extract_strided_slice %135 {offsets = [0, 96], sizes = [2, 32], strides = [1, 1]} : vector<2x128xf32> to vector<2x32xf32>
    %140 = arith.mulf %137, %91 : vector<2x32xf32>
    %141 = arith.mulf %136, %138 : vector<2x32xf32>
    %142 = arith.addf %140, %141 : vector<2x32xf32>
    %143 = math.tanh %142 : vector<2x32xf32>
    %144 = arith.mulf %139, %143 : vector<2x32xf32>
    %145 = tpu.concatenate %144, %119 in 1 : vector<2x32xf32>, vector<2x32xf32> -> vector<2x64xf32>
    %cst_35 = arith.constant dense<0.000000e+00> : vector<2x128xf32>
    %146 = tpu.matmul %145, %15, %cst_35 {dimension_numbers = #tpu.dot_dimension_numbers<[1], [0], [0], [1], [0, 0, 1, 1], [], []>} : vector<2x64xf32>, vector<64x128xf32>, vector<2x128xf32> -> vector<2x128xf32>
    %147 = vector.broadcast %16 : vector<1x128xf32> to vector<2x128xf32>
    %148 = arith.addf %146, %147 : vector<2x128xf32>
    %149 = tpu.iota {dimensions = array<i32: 1>} : vector<2x128xi32>
    %c64_i32_36 = arith.constant 64 : i32
    %150 = vector.broadcast %c64_i32_36 : i32 to vector<2x128xi32>
    %151 = arith.cmpi sge, %149, %150 : vector<2x128xi32>
    %c96_i32_37 = arith.constant 96 : i32
    %152 = vector.broadcast %c96_i32_37 : i32 to vector<2x128xi32>
    %153 = arith.cmpi slt, %149, %152 : vector<2x128xi32>
    %154 = arith.andi %151, %153 : vector<2x128xi1>
    %155 = math.tanh %148 : vector<2x128xf32>
    %156 = arith.negf %148 : vector<2x128xf32>
    %157 = math.exp %156 : vector<2x128xf32>
    %cst_38 = arith.constant 1.000000e+00 : f32
    %158 = vector.broadcast %cst_38 : f32 to vector<2x128xf32>
    %159 = arith.addf %158, %157 : vector<2x128xf32>
    %160 = arith.divf %158, %159 : vector<2x128xf32>
    %161 = arith.select %154, %155, %160 : vector<2x128xi1>, vector<2x128xf32>
    %162 = vector.extract_strided_slice %161 {offsets = [0, 0], sizes = [2, 32], strides = [1, 1]} : vector<2x128xf32> to vector<2x32xf32>
    %163 = vector.extract_strided_slice %161 {offsets = [0, 32], sizes = [2, 32], strides = [1, 1]} : vector<2x128xf32> to vector<2x32xf32>
    %164 = vector.extract_strided_slice %161 {offsets = [0, 64], sizes = [2, 32], strides = [1, 1]} : vector<2x128xf32> to vector<2x32xf32>
    %165 = vector.extract_strided_slice %161 {offsets = [0, 96], sizes = [2, 32], strides = [1, 1]} : vector<2x128xf32> to vector<2x32xf32>
    %166 = arith.mulf %163, %117 : vector<2x32xf32>
    %167 = arith.mulf %162, %164 : vector<2x32xf32>
    %168 = arith.addf %166, %167 : vector<2x32xf32>
    %169 = math.tanh %168 : vector<2x32xf32>
    %170 = arith.mulf %165, %169 : vector<2x32xf32>
    %171 = vector.extract_strided_slice %13 {offsets = [6, 0], sizes = [2, 128], strides = [1, 1]} : vector<16x128xf32> to vector<2x128xf32>
    %cst_39 = arith.constant dense<0.000000e+00> : vector<2x128xf32>
    %172 = tpu.matmul %144, %14, %cst_39 {dimension_numbers = #tpu.dot_dimension_numbers<[1], [0], [0], [1], [0, 0, 1, 1], [], []>} : vector<2x32xf32>, vector<32x128xf32>, vector<2x128xf32> -> vector<2x128xf32>
    %173 = arith.addf %171, %172 : vector<2x128xf32>
    %174 = tpu.iota {dimensions = array<i32: 1>} : vector<2x128xi32>
    %c64_i32_40 = arith.constant 64 : i32
    %175 = vector.broadcast %c64_i32_40 : i32 to vector<2x128xi32>
    %176 = arith.cmpi sge, %174, %175 : vector<2x128xi32>
    %c96_i32_41 = arith.constant 96 : i32
    %177 = vector.broadcast %c96_i32_41 : i32 to vector<2x128xi32>
    %178 = arith.cmpi slt, %174, %177 : vector<2x128xi32>
    %179 = arith.andi %176, %178 : vector<2x128xi1>
    %180 = math.tanh %173 : vector<2x128xf32>
    %181 = arith.negf %173 : vector<2x128xf32>
    %182 = math.exp %181 : vector<2x128xf32>
    %cst_42 = arith.constant 1.000000e+00 : f32
    %183 = vector.broadcast %cst_42 : f32 to vector<2x128xf32>
    %184 = arith.addf %183, %182 : vector<2x128xf32>
    %185 = arith.divf %183, %184 : vector<2x128xf32>
    %186 = arith.select %179, %180, %185 : vector<2x128xi1>, vector<2x128xf32>
    %187 = vector.extract_strided_slice %186 {offsets = [0, 0], sizes = [2, 32], strides = [1, 1]} : vector<2x128xf32> to vector<2x32xf32>
    %188 = vector.extract_strided_slice %186 {offsets = [0, 32], sizes = [2, 32], strides = [1, 1]} : vector<2x128xf32> to vector<2x32xf32>
    %189 = vector.extract_strided_slice %186 {offsets = [0, 64], sizes = [2, 32], strides = [1, 1]} : vector<2x128xf32> to vector<2x32xf32>
    %190 = vector.extract_strided_slice %186 {offsets = [0, 96], sizes = [2, 32], strides = [1, 1]} : vector<2x128xf32> to vector<2x32xf32>
    %191 = arith.mulf %188, %142 : vector<2x32xf32>
    %192 = arith.mulf %187, %189 : vector<2x32xf32>
    %193 = arith.addf %191, %192 : vector<2x32xf32>
    %194 = math.tanh %193 : vector<2x32xf32>
    %195 = arith.mulf %190, %194 : vector<2x32xf32>
    %196 = tpu.concatenate %195, %170 in 1 : vector<2x32xf32>, vector<2x32xf32> -> vector<2x64xf32>
    %cst_43 = arith.constant dense<0.000000e+00> : vector<2x128xf32>
    %197 = tpu.matmul %196, %15, %cst_43 {dimension_numbers = #tpu.dot_dimension_numbers<[1], [0], [0], [1], [0, 0, 1, 1], [], []>} : vector<2x64xf32>, vector<64x128xf32>, vector<2x128xf32> -> vector<2x128xf32>
    %198 = vector.broadcast %16 : vector<1x128xf32> to vector<2x128xf32>
    %199 = arith.addf %197, %198 : vector<2x128xf32>
    %200 = tpu.iota {dimensions = array<i32: 1>} : vector<2x128xi32>
    %c64_i32_44 = arith.constant 64 : i32
    %201 = vector.broadcast %c64_i32_44 : i32 to vector<2x128xi32>
    %202 = arith.cmpi sge, %200, %201 : vector<2x128xi32>
    %c96_i32_45 = arith.constant 96 : i32
    %203 = vector.broadcast %c96_i32_45 : i32 to vector<2x128xi32>
    %204 = arith.cmpi slt, %200, %203 : vector<2x128xi32>
    %205 = arith.andi %202, %204 : vector<2x128xi1>
    %206 = math.tanh %199 : vector<2x128xf32>
    %207 = arith.negf %199 : vector<2x128xf32>
    %208 = math.exp %207 : vector<2x128xf32>
    %cst_46 = arith.constant 1.000000e+00 : f32
    %209 = vector.broadcast %cst_46 : f32 to vector<2x128xf32>
    %210 = arith.addf %209, %208 : vector<2x128xf32>
    %211 = arith.divf %209, %210 : vector<2x128xf32>
    %212 = arith.select %205, %206, %211 : vector<2x128xi1>, vector<2x128xf32>
    %213 = vector.extract_strided_slice %212 {offsets = [0, 0], sizes = [2, 32], strides = [1, 1]} : vector<2x128xf32> to vector<2x32xf32>
    %214 = vector.extract_strided_slice %212 {offsets = [0, 32], sizes = [2, 32], strides = [1, 1]} : vector<2x128xf32> to vector<2x32xf32>
    %215 = vector.extract_strided_slice %212 {offsets = [0, 64], sizes = [2, 32], strides = [1, 1]} : vector<2x128xf32> to vector<2x32xf32>
    %216 = vector.extract_strided_slice %212 {offsets = [0, 96], sizes = [2, 32], strides = [1, 1]} : vector<2x128xf32> to vector<2x32xf32>
    %217 = arith.mulf %214, %168 : vector<2x32xf32>
    %218 = arith.mulf %213, %215 : vector<2x32xf32>
    %219 = arith.addf %217, %218 : vector<2x32xf32>
    %220 = math.tanh %219 : vector<2x32xf32>
    %221 = arith.mulf %216, %220 : vector<2x32xf32>
    %222 = vector.extract_strided_slice %13 {offsets = [8, 0], sizes = [2, 128], strides = [1, 1]} : vector<16x128xf32> to vector<2x128xf32>
    %cst_47 = arith.constant dense<0.000000e+00> : vector<2x128xf32>
    %223 = tpu.matmul %195, %14, %cst_47 {dimension_numbers = #tpu.dot_dimension_numbers<[1], [0], [0], [1], [0, 0, 1, 1], [], []>} : vector<2x32xf32>, vector<32x128xf32>, vector<2x128xf32> -> vector<2x128xf32>
    %224 = arith.addf %222, %223 : vector<2x128xf32>
    %225 = tpu.iota {dimensions = array<i32: 1>} : vector<2x128xi32>
    %c64_i32_48 = arith.constant 64 : i32
    %226 = vector.broadcast %c64_i32_48 : i32 to vector<2x128xi32>
    %227 = arith.cmpi sge, %225, %226 : vector<2x128xi32>
    %c96_i32_49 = arith.constant 96 : i32
    %228 = vector.broadcast %c96_i32_49 : i32 to vector<2x128xi32>
    %229 = arith.cmpi slt, %225, %228 : vector<2x128xi32>
    %230 = arith.andi %227, %229 : vector<2x128xi1>
    %231 = math.tanh %224 : vector<2x128xf32>
    %232 = arith.negf %224 : vector<2x128xf32>
    %233 = math.exp %232 : vector<2x128xf32>
    %cst_50 = arith.constant 1.000000e+00 : f32
    %234 = vector.broadcast %cst_50 : f32 to vector<2x128xf32>
    %235 = arith.addf %234, %233 : vector<2x128xf32>
    %236 = arith.divf %234, %235 : vector<2x128xf32>
    %237 = arith.select %230, %231, %236 : vector<2x128xi1>, vector<2x128xf32>
    %238 = vector.extract_strided_slice %237 {offsets = [0, 0], sizes = [2, 32], strides = [1, 1]} : vector<2x128xf32> to vector<2x32xf32>
    %239 = vector.extract_strided_slice %237 {offsets = [0, 32], sizes = [2, 32], strides = [1, 1]} : vector<2x128xf32> to vector<2x32xf32>
    %240 = vector.extract_strided_slice %237 {offsets = [0, 64], sizes = [2, 32], strides = [1, 1]} : vector<2x128xf32> to vector<2x32xf32>
    %241 = vector.extract_strided_slice %237 {offsets = [0, 96], sizes = [2, 32], strides = [1, 1]} : vector<2x128xf32> to vector<2x32xf32>
    %242 = arith.mulf %239, %193 : vector<2x32xf32>
    %243 = arith.mulf %238, %240 : vector<2x32xf32>
    %244 = arith.addf %242, %243 : vector<2x32xf32>
    %245 = math.tanh %244 : vector<2x32xf32>
    %246 = arith.mulf %241, %245 : vector<2x32xf32>
    %247 = tpu.concatenate %246, %221 in 1 : vector<2x32xf32>, vector<2x32xf32> -> vector<2x64xf32>
    %cst_51 = arith.constant dense<0.000000e+00> : vector<2x128xf32>
    %248 = tpu.matmul %247, %15, %cst_51 {dimension_numbers = #tpu.dot_dimension_numbers<[1], [0], [0], [1], [0, 0, 1, 1], [], []>} : vector<2x64xf32>, vector<64x128xf32>, vector<2x128xf32> -> vector<2x128xf32>
    %249 = vector.broadcast %16 : vector<1x128xf32> to vector<2x128xf32>
    %250 = arith.addf %248, %249 : vector<2x128xf32>
    %251 = tpu.iota {dimensions = array<i32: 1>} : vector<2x128xi32>
    %c64_i32_52 = arith.constant 64 : i32
    %252 = vector.broadcast %c64_i32_52 : i32 to vector<2x128xi32>
    %253 = arith.cmpi sge, %251, %252 : vector<2x128xi32>
    %c96_i32_53 = arith.constant 96 : i32
    %254 = vector.broadcast %c96_i32_53 : i32 to vector<2x128xi32>
    %255 = arith.cmpi slt, %251, %254 : vector<2x128xi32>
    %256 = arith.andi %253, %255 : vector<2x128xi1>
    %257 = math.tanh %250 : vector<2x128xf32>
    %258 = arith.negf %250 : vector<2x128xf32>
    %259 = math.exp %258 : vector<2x128xf32>
    %cst_54 = arith.constant 1.000000e+00 : f32
    %260 = vector.broadcast %cst_54 : f32 to vector<2x128xf32>
    %261 = arith.addf %260, %259 : vector<2x128xf32>
    %262 = arith.divf %260, %261 : vector<2x128xf32>
    %263 = arith.select %256, %257, %262 : vector<2x128xi1>, vector<2x128xf32>
    %264 = vector.extract_strided_slice %263 {offsets = [0, 0], sizes = [2, 32], strides = [1, 1]} : vector<2x128xf32> to vector<2x32xf32>
    %265 = vector.extract_strided_slice %263 {offsets = [0, 32], sizes = [2, 32], strides = [1, 1]} : vector<2x128xf32> to vector<2x32xf32>
    %266 = vector.extract_strided_slice %263 {offsets = [0, 64], sizes = [2, 32], strides = [1, 1]} : vector<2x128xf32> to vector<2x32xf32>
    %267 = vector.extract_strided_slice %263 {offsets = [0, 96], sizes = [2, 32], strides = [1, 1]} : vector<2x128xf32> to vector<2x32xf32>
    %268 = arith.mulf %265, %219 : vector<2x32xf32>
    %269 = arith.mulf %264, %266 : vector<2x32xf32>
    %270 = arith.addf %268, %269 : vector<2x32xf32>
    %271 = math.tanh %270 : vector<2x32xf32>
    %272 = arith.mulf %267, %271 : vector<2x32xf32>
    %273 = vector.extract_strided_slice %13 {offsets = [10, 0], sizes = [2, 128], strides = [1, 1]} : vector<16x128xf32> to vector<2x128xf32>
    %cst_55 = arith.constant dense<0.000000e+00> : vector<2x128xf32>
    %274 = tpu.matmul %246, %14, %cst_55 {dimension_numbers = #tpu.dot_dimension_numbers<[1], [0], [0], [1], [0, 0, 1, 1], [], []>} : vector<2x32xf32>, vector<32x128xf32>, vector<2x128xf32> -> vector<2x128xf32>
    %275 = arith.addf %273, %274 : vector<2x128xf32>
    %276 = tpu.iota {dimensions = array<i32: 1>} : vector<2x128xi32>
    %c64_i32_56 = arith.constant 64 : i32
    %277 = vector.broadcast %c64_i32_56 : i32 to vector<2x128xi32>
    %278 = arith.cmpi sge, %276, %277 : vector<2x128xi32>
    %c96_i32_57 = arith.constant 96 : i32
    %279 = vector.broadcast %c96_i32_57 : i32 to vector<2x128xi32>
    %280 = arith.cmpi slt, %276, %279 : vector<2x128xi32>
    %281 = arith.andi %278, %280 : vector<2x128xi1>
    %282 = math.tanh %275 : vector<2x128xf32>
    %283 = arith.negf %275 : vector<2x128xf32>
    %284 = math.exp %283 : vector<2x128xf32>
    %cst_58 = arith.constant 1.000000e+00 : f32
    %285 = vector.broadcast %cst_58 : f32 to vector<2x128xf32>
    %286 = arith.addf %285, %284 : vector<2x128xf32>
    %287 = arith.divf %285, %286 : vector<2x128xf32>
    %288 = arith.select %281, %282, %287 : vector<2x128xi1>, vector<2x128xf32>
    %289 = vector.extract_strided_slice %288 {offsets = [0, 0], sizes = [2, 32], strides = [1, 1]} : vector<2x128xf32> to vector<2x32xf32>
    %290 = vector.extract_strided_slice %288 {offsets = [0, 32], sizes = [2, 32], strides = [1, 1]} : vector<2x128xf32> to vector<2x32xf32>
    %291 = vector.extract_strided_slice %288 {offsets = [0, 64], sizes = [2, 32], strides = [1, 1]} : vector<2x128xf32> to vector<2x32xf32>
    %292 = vector.extract_strided_slice %288 {offsets = [0, 96], sizes = [2, 32], strides = [1, 1]} : vector<2x128xf32> to vector<2x32xf32>
    %293 = arith.mulf %290, %244 : vector<2x32xf32>
    %294 = arith.mulf %289, %291 : vector<2x32xf32>
    %295 = arith.addf %293, %294 : vector<2x32xf32>
    %296 = math.tanh %295 : vector<2x32xf32>
    %297 = arith.mulf %292, %296 : vector<2x32xf32>
    %298 = tpu.concatenate %297, %272 in 1 : vector<2x32xf32>, vector<2x32xf32> -> vector<2x64xf32>
    %cst_59 = arith.constant dense<0.000000e+00> : vector<2x128xf32>
    %299 = tpu.matmul %298, %15, %cst_59 {dimension_numbers = #tpu.dot_dimension_numbers<[1], [0], [0], [1], [0, 0, 1, 1], [], []>} : vector<2x64xf32>, vector<64x128xf32>, vector<2x128xf32> -> vector<2x128xf32>
    %300 = vector.broadcast %16 : vector<1x128xf32> to vector<2x128xf32>
    %301 = arith.addf %299, %300 : vector<2x128xf32>
    %302 = tpu.iota {dimensions = array<i32: 1>} : vector<2x128xi32>
    %c64_i32_60 = arith.constant 64 : i32
    %303 = vector.broadcast %c64_i32_60 : i32 to vector<2x128xi32>
    %304 = arith.cmpi sge, %302, %303 : vector<2x128xi32>
    %c96_i32_61 = arith.constant 96 : i32
    %305 = vector.broadcast %c96_i32_61 : i32 to vector<2x128xi32>
    %306 = arith.cmpi slt, %302, %305 : vector<2x128xi32>
    %307 = arith.andi %304, %306 : vector<2x128xi1>
    %308 = math.tanh %301 : vector<2x128xf32>
    %309 = arith.negf %301 : vector<2x128xf32>
    %310 = math.exp %309 : vector<2x128xf32>
    %cst_62 = arith.constant 1.000000e+00 : f32
    %311 = vector.broadcast %cst_62 : f32 to vector<2x128xf32>
    %312 = arith.addf %311, %310 : vector<2x128xf32>
    %313 = arith.divf %311, %312 : vector<2x128xf32>
    %314 = arith.select %307, %308, %313 : vector<2x128xi1>, vector<2x128xf32>
    %315 = vector.extract_strided_slice %314 {offsets = [0, 0], sizes = [2, 32], strides = [1, 1]} : vector<2x128xf32> to vector<2x32xf32>
    %316 = vector.extract_strided_slice %314 {offsets = [0, 32], sizes = [2, 32], strides = [1, 1]} : vector<2x128xf32> to vector<2x32xf32>
    %317 = vector.extract_strided_slice %314 {offsets = [0, 64], sizes = [2, 32], strides = [1, 1]} : vector<2x128xf32> to vector<2x32xf32>
    %318 = vector.extract_strided_slice %314 {offsets = [0, 96], sizes = [2, 32], strides = [1, 1]} : vector<2x128xf32> to vector<2x32xf32>
    %319 = arith.mulf %316, %270 : vector<2x32xf32>
    %320 = arith.mulf %315, %317 : vector<2x32xf32>
    %321 = arith.addf %319, %320 : vector<2x32xf32>
    %322 = math.tanh %321 : vector<2x32xf32>
    %323 = arith.mulf %318, %322 : vector<2x32xf32>
    %324 = vector.extract_strided_slice %13 {offsets = [12, 0], sizes = [2, 128], strides = [1, 1]} : vector<16x128xf32> to vector<2x128xf32>
    %cst_63 = arith.constant dense<0.000000e+00> : vector<2x128xf32>
    %325 = tpu.matmul %297, %14, %cst_63 {dimension_numbers = #tpu.dot_dimension_numbers<[1], [0], [0], [1], [0, 0, 1, 1], [], []>} : vector<2x32xf32>, vector<32x128xf32>, vector<2x128xf32> -> vector<2x128xf32>
    %326 = arith.addf %324, %325 : vector<2x128xf32>
    %327 = tpu.iota {dimensions = array<i32: 1>} : vector<2x128xi32>
    %c64_i32_64 = arith.constant 64 : i32
    %328 = vector.broadcast %c64_i32_64 : i32 to vector<2x128xi32>
    %329 = arith.cmpi sge, %327, %328 : vector<2x128xi32>
    %c96_i32_65 = arith.constant 96 : i32
    %330 = vector.broadcast %c96_i32_65 : i32 to vector<2x128xi32>
    %331 = arith.cmpi slt, %327, %330 : vector<2x128xi32>
    %332 = arith.andi %329, %331 : vector<2x128xi1>
    %333 = math.tanh %326 : vector<2x128xf32>
    %334 = arith.negf %326 : vector<2x128xf32>
    %335 = math.exp %334 : vector<2x128xf32>
    %cst_66 = arith.constant 1.000000e+00 : f32
    %336 = vector.broadcast %cst_66 : f32 to vector<2x128xf32>
    %337 = arith.addf %336, %335 : vector<2x128xf32>
    %338 = arith.divf %336, %337 : vector<2x128xf32>
    %339 = arith.select %332, %333, %338 : vector<2x128xi1>, vector<2x128xf32>
    %340 = vector.extract_strided_slice %339 {offsets = [0, 0], sizes = [2, 32], strides = [1, 1]} : vector<2x128xf32> to vector<2x32xf32>
    %341 = vector.extract_strided_slice %339 {offsets = [0, 32], sizes = [2, 32], strides = [1, 1]} : vector<2x128xf32> to vector<2x32xf32>
    %342 = vector.extract_strided_slice %339 {offsets = [0, 64], sizes = [2, 32], strides = [1, 1]} : vector<2x128xf32> to vector<2x32xf32>
    %343 = vector.extract_strided_slice %339 {offsets = [0, 96], sizes = [2, 32], strides = [1, 1]} : vector<2x128xf32> to vector<2x32xf32>
    %344 = arith.mulf %341, %295 : vector<2x32xf32>
    %345 = arith.mulf %340, %342 : vector<2x32xf32>
    %346 = arith.addf %344, %345 : vector<2x32xf32>
    %347 = math.tanh %346 : vector<2x32xf32>
    %348 = arith.mulf %343, %347 : vector<2x32xf32>
    %349 = tpu.concatenate %348, %323 in 1 : vector<2x32xf32>, vector<2x32xf32> -> vector<2x64xf32>
    %cst_67 = arith.constant dense<0.000000e+00> : vector<2x128xf32>
    %350 = tpu.matmul %349, %15, %cst_67 {dimension_numbers = #tpu.dot_dimension_numbers<[1], [0], [0], [1], [0, 0, 1, 1], [], []>} : vector<2x64xf32>, vector<64x128xf32>, vector<2x128xf32> -> vector<2x128xf32>
    %351 = vector.broadcast %16 : vector<1x128xf32> to vector<2x128xf32>
    %352 = arith.addf %350, %351 : vector<2x128xf32>
    %353 = tpu.iota {dimensions = array<i32: 1>} : vector<2x128xi32>
    %c64_i32_68 = arith.constant 64 : i32
    %354 = vector.broadcast %c64_i32_68 : i32 to vector<2x128xi32>
    %355 = arith.cmpi sge, %353, %354 : vector<2x128xi32>
    %c96_i32_69 = arith.constant 96 : i32
    %356 = vector.broadcast %c96_i32_69 : i32 to vector<2x128xi32>
    %357 = arith.cmpi slt, %353, %356 : vector<2x128xi32>
    %358 = arith.andi %355, %357 : vector<2x128xi1>
    %359 = math.tanh %352 : vector<2x128xf32>
    %360 = arith.negf %352 : vector<2x128xf32>
    %361 = math.exp %360 : vector<2x128xf32>
    %cst_70 = arith.constant 1.000000e+00 : f32
    %362 = vector.broadcast %cst_70 : f32 to vector<2x128xf32>
    %363 = arith.addf %362, %361 : vector<2x128xf32>
    %364 = arith.divf %362, %363 : vector<2x128xf32>
    %365 = arith.select %358, %359, %364 : vector<2x128xi1>, vector<2x128xf32>
    %366 = vector.extract_strided_slice %365 {offsets = [0, 0], sizes = [2, 32], strides = [1, 1]} : vector<2x128xf32> to vector<2x32xf32>
    %367 = vector.extract_strided_slice %365 {offsets = [0, 32], sizes = [2, 32], strides = [1, 1]} : vector<2x128xf32> to vector<2x32xf32>
    %368 = vector.extract_strided_slice %365 {offsets = [0, 64], sizes = [2, 32], strides = [1, 1]} : vector<2x128xf32> to vector<2x32xf32>
    %369 = vector.extract_strided_slice %365 {offsets = [0, 96], sizes = [2, 32], strides = [1, 1]} : vector<2x128xf32> to vector<2x32xf32>
    %370 = arith.mulf %367, %321 : vector<2x32xf32>
    %371 = arith.mulf %366, %368 : vector<2x32xf32>
    %372 = arith.addf %370, %371 : vector<2x32xf32>
    %373 = math.tanh %372 : vector<2x32xf32>
    %374 = arith.mulf %369, %373 : vector<2x32xf32>
    %375 = vector.extract_strided_slice %13 {offsets = [14, 0], sizes = [2, 128], strides = [1, 1]} : vector<16x128xf32> to vector<2x128xf32>
    %cst_71 = arith.constant dense<0.000000e+00> : vector<2x128xf32>
    %376 = tpu.matmul %348, %14, %cst_71 {dimension_numbers = #tpu.dot_dimension_numbers<[1], [0], [0], [1], [0, 0, 1, 1], [], []>} : vector<2x32xf32>, vector<32x128xf32>, vector<2x128xf32> -> vector<2x128xf32>
    %377 = arith.addf %375, %376 : vector<2x128xf32>
    %378 = tpu.iota {dimensions = array<i32: 1>} : vector<2x128xi32>
    %c64_i32_72 = arith.constant 64 : i32
    %379 = vector.broadcast %c64_i32_72 : i32 to vector<2x128xi32>
    %380 = arith.cmpi sge, %378, %379 : vector<2x128xi32>
    %c96_i32_73 = arith.constant 96 : i32
    %381 = vector.broadcast %c96_i32_73 : i32 to vector<2x128xi32>
    %382 = arith.cmpi slt, %378, %381 : vector<2x128xi32>
    %383 = arith.andi %380, %382 : vector<2x128xi1>
    %384 = math.tanh %377 : vector<2x128xf32>
    %385 = arith.negf %377 : vector<2x128xf32>
    %386 = math.exp %385 : vector<2x128xf32>
    %cst_74 = arith.constant 1.000000e+00 : f32
    %387 = vector.broadcast %cst_74 : f32 to vector<2x128xf32>
    %388 = arith.addf %387, %386 : vector<2x128xf32>
    %389 = arith.divf %387, %388 : vector<2x128xf32>
    %390 = arith.select %383, %384, %389 : vector<2x128xi1>, vector<2x128xf32>
    %391 = vector.extract_strided_slice %390 {offsets = [0, 0], sizes = [2, 32], strides = [1, 1]} : vector<2x128xf32> to vector<2x32xf32>
    %392 = vector.extract_strided_slice %390 {offsets = [0, 32], sizes = [2, 32], strides = [1, 1]} : vector<2x128xf32> to vector<2x32xf32>
    %393 = vector.extract_strided_slice %390 {offsets = [0, 64], sizes = [2, 32], strides = [1, 1]} : vector<2x128xf32> to vector<2x32xf32>
    %394 = vector.extract_strided_slice %390 {offsets = [0, 96], sizes = [2, 32], strides = [1, 1]} : vector<2x128xf32> to vector<2x32xf32>
    %395 = arith.mulf %392, %346 : vector<2x32xf32>
    %396 = arith.mulf %391, %393 : vector<2x32xf32>
    %397 = arith.addf %395, %396 : vector<2x32xf32>
    %398 = math.tanh %397 : vector<2x32xf32>
    %399 = arith.mulf %394, %398 : vector<2x32xf32>
    %400 = tpu.concatenate %399, %374 in 1 : vector<2x32xf32>, vector<2x32xf32> -> vector<2x64xf32>
    %cst_75 = arith.constant dense<0.000000e+00> : vector<2x128xf32>
    %401 = tpu.matmul %400, %15, %cst_75 {dimension_numbers = #tpu.dot_dimension_numbers<[1], [0], [0], [1], [0, 0, 1, 1], [], []>} : vector<2x64xf32>, vector<64x128xf32>, vector<2x128xf32> -> vector<2x128xf32>
    %402 = vector.broadcast %16 : vector<1x128xf32> to vector<2x128xf32>
    %403 = arith.addf %401, %402 : vector<2x128xf32>
    %404 = tpu.iota {dimensions = array<i32: 1>} : vector<2x128xi32>
    %c64_i32_76 = arith.constant 64 : i32
    %405 = vector.broadcast %c64_i32_76 : i32 to vector<2x128xi32>
    %406 = arith.cmpi sge, %404, %405 : vector<2x128xi32>
    %c96_i32_77 = arith.constant 96 : i32
    %407 = vector.broadcast %c96_i32_77 : i32 to vector<2x128xi32>
    %408 = arith.cmpi slt, %404, %407 : vector<2x128xi32>
    %409 = arith.andi %406, %408 : vector<2x128xi1>
    %410 = math.tanh %403 : vector<2x128xf32>
    %411 = arith.negf %403 : vector<2x128xf32>
    %412 = math.exp %411 : vector<2x128xf32>
    %cst_78 = arith.constant 1.000000e+00 : f32
    %413 = vector.broadcast %cst_78 : f32 to vector<2x128xf32>
    %414 = arith.addf %413, %412 : vector<2x128xf32>
    %415 = arith.divf %413, %414 : vector<2x128xf32>
    %416 = arith.select %409, %410, %415 : vector<2x128xi1>, vector<2x128xf32>
    %417 = vector.extract_strided_slice %416 {offsets = [0, 0], sizes = [2, 32], strides = [1, 1]} : vector<2x128xf32> to vector<2x32xf32>
    %418 = vector.extract_strided_slice %416 {offsets = [0, 32], sizes = [2, 32], strides = [1, 1]} : vector<2x128xf32> to vector<2x32xf32>
    %419 = vector.extract_strided_slice %416 {offsets = [0, 64], sizes = [2, 32], strides = [1, 1]} : vector<2x128xf32> to vector<2x32xf32>
    %420 = vector.extract_strided_slice %416 {offsets = [0, 96], sizes = [2, 32], strides = [1, 1]} : vector<2x128xf32> to vector<2x32xf32>
    %421 = arith.mulf %418, %372 : vector<2x32xf32>
    %422 = arith.mulf %417, %419 : vector<2x32xf32>
    %423 = arith.addf %421, %422 : vector<2x32xf32>
    %424 = math.tanh %423 : vector<2x32xf32>
    %425 = arith.mulf %420, %424 : vector<2x32xf32>
    %c0_79 = arith.constant 0 : index
    %c0_80 = arith.constant 0 : index
    %426 = vector.load %arg7[%c0_79, %c0_80] : memref<32x3xf32, #tpu.memory_space<vmem>>, vector<32x3xf32>
    %cst_81 = arith.constant dense<0.000000e+00> : vector<2x3xf32>
    %427 = tpu.matmul %425, %426, %cst_81 {dimension_numbers = #tpu.dot_dimension_numbers<[1], [0], [0], [1], [0, 0, 1, 1], [], []>} : vector<2x32xf32>, vector<32x3xf32>, vector<2x3xf32> -> vector<2x3xf32>
    %c0_82 = arith.constant 0 : index
    %c0_83 = arith.constant 0 : index
    %428 = vector.load %arg8[%c0_82, %c0_83] : memref<1x3xf32, #tpu.memory_space<vmem>>, vector<1x3xf32>
    %429 = vector.broadcast %428 : vector<1x3xf32> to vector<2x3xf32>
    %430 = arith.addf %427, %429 : vector<2x3xf32>
    %c0_84 = arith.constant 0 : index
    %c0_85 = arith.constant 0 : index
    %431 = vector.load %arg9[%c0_84, %c0_85] : memref<2x3xf32, #tpu.memory_space<vmem>>, vector<2x3xf32>
    tpu.vector_store %arg9[%c0_84, %c0_85], %430 {strides = array<i32>} : memref<2x3xf32, #tpu.memory_space<vmem>>, vector<2x3xf32>,
    return
  }
}

</mosaic_0001>

<llo_original>
// kernel: tpu_custom_call.1
$region0: #{tpu_custom_call.1}
  #allocation0 [shape = 'u32[]', space=smem, size = 0x4, offset = 0x4, fixed_abs, tag = 'smem constant byte address 0x4 - core index']
  #allocation1 [shape = 'u32[144,128]{1,0:T(1,128)}', space=vmem, size = 0x12000, scoped, tag = 'internal scratch']
  %s0 = inlined_call_operand.vmem [shape: s32[16,1], index: 0, kind: input, shape index: {}]
  %s1 = inlined_call_operand.vmem [shape: f32[50,32], index: 1, kind: input, shape index: {}]
  %s2 = inlined_call_operand.vmem [shape: f32[32,128], index: 2, kind: input, shape index: {}]
  %s3 = inlined_call_operand.hbm [shape: f32[32,128], index: 3, kind: input, shape index: {}]
  %s4 = inlined_call_operand.vmem [shape: f32[1,128], index: 4, kind: input, shape index: {}]
  %s5 = inlined_call_operand.vmem [shape: f32[64,128], index: 5, kind: input, shape index: {}]
  %s6 = inlined_call_operand.vmem [shape: f32[1,128], index: 6, kind: input, shape index: {}]
  %s7 = inlined_call_operand.vmem [shape: f32[32,3], index: 7, kind: input, shape index: {}]
  %s8 = inlined_call_operand.vmem [shape: f32[1,3], index: 8, kind: input, shape index: {}]
  %s9 = inlined_call_operand.hbm [shape: f32[2,3], index: 9, kind: output, shape index: {}]
  %s10 = sld [smem:[#allocation0]]
  $region50: #{tpu_custom_call.1} parent=0
    _
  %s12 = ssub.s32 1, %s10
  %s13 = scalar_select 0, %s12, %s10
  $region1: #{tpu_custom_call.1} parent=0
    #allocation2 [shape = 'u8[16384]{0}', space=vmem, size = 0x4000, scoped, tag = 'input window, operand 3, single buffered']
    #allocation3 [shape = 's32[1]{0}', space=sflag, size = 0x4, scoped, tag = 'scoped memory for tpu_custom_call.1']
    #allocation4 [shape = 's32[1]{0}', space=sflag, size = 0x4, scoped, tag = 'scoped memory for tpu_custom_call.1']
    #allocation5 [shape = 'u8[1024]{0}', space=vmem, size = 0x400, scoped, tag = 'output window, operand 0, single buffered']
    %14 = vsyncpa [#allocation3], 0
    %15 = vsyncpa [#allocation4], 0
    // Predicated region
    $region2: #{tpu_custom_call.1} parent=1 // pred_check
      _
    $region3: #{tpu_custom_call.1} parent=1 // pred_check_branch
      %17 = sbr.rel (0) target = $region5
    $region4: #{tpu_custom_call.1} parent=1 // pred_region
      _
    $region5: #{tpu_custom_call.1} parent=1 // pred_fallthru
      _
    // Predicated region
    $region6: #{tpu_custom_call.1} parent=1 // pred_check
      _
    $region7: #{tpu_custom_call.1} parent=1 // pred_check_branch
      %19 = sbr.rel (0) target = $region9
    $region8: #{tpu_custom_call.1} parent=1 // pred_region
      _
    $region9: #{tpu_custom_call.1} parent=1 // pred_fallthru
      _
    // Predicated region
    $region10: #{tpu_custom_call.1} parent=1 // pred_check
      _
    $region11: #{tpu_custom_call.1} parent=1 // pred_check_branch
      %21 = sbr.rel (0) target = $region13
    $region12: #{tpu_custom_call.1} parent=1 // pred_region
      _
    $region13: #{tpu_custom_call.1} parent=1 // pred_fallthru
      _
    // Predicated region
    $region14: #{tpu_custom_call.1} parent=1 // pred_check
      _
    $region15: #{tpu_custom_call.1} parent=1 // pred_check_branch
      %23 = sbr.rel (0) target = $region17
    $region16: #{tpu_custom_call.1} parent=1 // pred_region
      %s25 = ssub.s32 512, 512
      %26 = vsyncadd [#allocation3], %s25
      %s27 = sshll.u32 [#allocation2], 4
      %s28 = int_to_ptr.vmem [resolvable:$true] %s27
      %33 = dma.hbm_to_vmem [thread:$0]  %s3, 512, %s28, [#allocation3], 128, 128, 8
    $region17: #{tpu_custom_call.1} parent=1 // pred_fallthru
      _
    // Predicated region
    $region18: #{tpu_custom_call.1} parent=1 // pred_check
      _
    $region19: #{tpu_custom_call.1} parent=1 // pred_check_branch
      %35 = sbr.rel (0) target = $region21
    $region20: #{tpu_custom_call.1} parent=1 // pred_region
      _
    $region21: #{tpu_custom_call.1} parent=1 // pred_fallthru
      _
    // Predicated region
    $region22: #{tpu_custom_call.1} parent=1 // pred_check
      _
    $region23: #{tpu_custom_call.1} parent=1 // pred_check_branch
      %37 = sbr.rel (0) target = $region25
    $region24: #{tpu_custom_call.1} parent=1 // pred_region
      _
    $region25: #{tpu_custom_call.1} parent=1 // pred_fallthru
      _
    // Predicated region
    $region26: #{tpu_custom_call.1} parent=1 // pred_check
      _
    $region27: #{tpu_custom_call.1} parent=1 // pred_check_branch
      %39 = sbr.rel (0) target = $region29
    $region28: #{tpu_custom_call.1} parent=1 // pred_region
      _
    $region29: #{tpu_custom_call.1} parent=1 // pred_fallthru
      _
    // Predicated region
    $region30: #{tpu_custom_call.1} parent=1 // pred_check
      _
    $region31: #{tpu_custom_call.1} parent=1 // pred_check_branch
      %41 = sbr.rel (0) target = $region33
    $region32: #{tpu_custom_call.1} parent=1 // pred_region
      _
    $region33: #{tpu_custom_call.1} parent=1 // pred_fallthru
      _
    // Predicated region
    $region34: #{tpu_custom_call.1} parent=1 // pred_check
      _
    $region35: #{tpu_custom_call.1} parent=1 // pred_check_branch
      %43 = sbr.rel (0) target = $region37
    $region36: #{tpu_custom_call.1} parent=1 // pred_region
      _
    $region37: #{tpu_custom_call.1} parent=1 // pred_fallthru
      _
    // Predicated region
    $region38: #{tpu_custom_call.1} parent=1 // pred_check
      _
    $region39: #{tpu_custom_call.1} parent=1 // pred_check_branch
      %45 = sbr.rel (0) target = $region41
    $region40: #{tpu_custom_call.1} parent=1 // pred_region
      %46 = dma.done [#allocation3], 512
    $region41: #{tpu_custom_call.1} parent=1 // pred_fallthru
      _
    %v47 = vld [vmem:[%s0] sm:$0xff]
    %v48 = vld [vmem:[%s0 + $0x8] sm:$0xff]
    %v49 = vlaneseq
    %v50 = vand.u32 %v49, 127
    %51 = vset.pattern.permute.xlu0 0
    %52 = vperm.xlu0 %51, %v47
    %v53 = vpop.permute.xlu0 %52
    %54 = vset.pattern.permute.xlu0 0
    %55 = vperm.xlu0 %54, %v48
    %v56 = vpop.permute.xlu0 %55
    %vm57 = vcmp.eq.s32.totalorder %v50, %v53
    %vm58 = vcmp.eq.s32.totalorder %v50, %v56
    %v59 = vsel %vm57, 1.0, 0.0
    %v60 = vsel %vm58, 1.0, 0.0
    %v61 = vld [vmem:[%s1] sm:$0xff]
    %v62 = vld [vmem:[%s1 + $0x8] sm:$0xff]
    %v63 = vld [vmem:[%s1 + $0x10] sm:$0xff]
    %v64 = vld [vmem:[%s1 + $0x18] sm:$0xff]
    %v65 = vld [vmem:[%s1 + $0x20] sm:$0xff]
    %v66 = vld [vmem:[%s1 + $0x28] sm:$0xff]
    %v67 = vld [vmem:[%s1 + $0x30] sm:$0x3]
    %vm68 = vcmask 408576
    %v70 = vsel %vm68, %v59, 0
    %v73 = vsel %vm68, %v60, 0
    %vm75 = vcmask 1041408
    %v77 = vsel %vm75, %v67, 0
    %79 = vmatprep.subr.mxu0 0.0
    %80 = vmatpush1.msra.mxu0 %v61
    %81 = vmatprep.subr.mxu0 0.0
    %82 = vmatpush1.msra.mxu0 %v62
    %83 = vmatprep.subr.mxu0 0.0
    %84 = vmatpush1.msra.mxu0 %v63
    %85 = vmatprep.subr.mxu0 0.0
    %86 = vmatpush1.msra.mxu0 %v64
    %87 = vmatprep.subr.mxu0 0.0
    %88 = vmatpush1.msra.mxu0 %v65
    %89 = vmatprep.subr.mxu0 0.0
    %90 = vmatpush1.msra.mxu0 %v66
    %91 = vmatprep.subr.mxu0 0.0
    %92 = vmatpush1.msra.mxu0 %v77
    %93 = vmatprep.subr.mxu0 0.0
    %94 = vmatpush1.msra.mxu0 0.0
    %95 = vmatprep.subr.mxu0 0.0
    %96 = vmatpush1.msra.mxu0 0.0
    %97 = vmatprep.subr.mxu0 0.0
    %98 = vmatpush1.msra.mxu0 0.0
    %99 = vmatprep.subr.mxu0 0.0
    %100 = vmatpush1.msra.mxu0 0.0
    %101 = vmatprep.subr.mxu0 0.0
    %102 = vmatpush1.msra.mxu0 0.0
    %103 = vmatprep.subr.mxu0 0.0
    %104 = vmatpush1.msra.mxu0 0.0
    %105 = vmatprep.subr.mxu0 0.0
    %106 = vmatpush1.msra.mxu0 0.0
    %107 = vmatprep.subr.mxu0 0.0
    %108 = vmatpush1.msra.mxu0 0.0
    %109 = vmatprep.subr.mxu0 0.0
    %110 = vmatpush1.msra.mxu0 0.0
    %111 = vmatprep.subr.mxu0 0.0
    %112 = vmatpush1.msra.mxu0 0.0
    %113 = vmatprep.subr.mxu0 0.0
    %114 = vmatpush1.msra.mxu0 0.0
    %115 = vmatprep.subr.mxu0 0.0
    %116 = vmatpush1.msra.mxu0 0.0
    %117 = vmatprep.subr.mxu0 0.0
    %118 = vmatpush1.msra.mxu0 0.0
    %119 = vmatprep.subr.mxu0 0.0
    %120 = vmatpush1.msra.mxu0 0.0
    %121 = vmatprep.subr.mxu0 0.0
    %122 = vmatpush1.msra.mxu0 0.0
    %123 = vmatprep.subr.mxu0 0.0
    %124 = vmatpush1.msra.mxu0 0.0
    %125 = vmatprep.subr.mxu0 0.0
    %126 = vmatpush1.msra.mxu0 0.0
    %127 = vmatprep.subr.mxu0 0.0
    %128 = vmatpush1.msra.mxu0 0.0
    %129 = vmatprep.subr.mxu0 0.0
    %130 = vmatpush1.msra.mxu0 0.0
    %131 = vmatprep.subr.mxu0 0.0
    %132 = vmatpush1.msra.mxu0 0.0
    %133 = vmatprep.subr.mxu0 0.0
    %134 = vmatpush1.msra.mxu0 0.0
    %135 = vmatprep.subr.mxu0 0.0
    %136 = vmatpush1.msra.mxu0 0.0
    %137 = vmatprep.subr.mxu0 0.0
    %138 = vmatpush1.msra.mxu0 0.0
    %139 = vmatprep.subr.mxu0 0.0
    %140 = vmatpush1.msra.mxu0 0.0
    %141 = vmatprep.subr.mxu0 0.0
    %142 = vmatpush1.msra.mxu0 0.0
    %143 = vmatprep.mubr.f32.mxu0 0.0
    %144 = vmatmul.mubr.f32.gmra.mrb[0].mxu0 %v70
    %v145 = vpop.f32.mrb[0].mxu0
    %v146 = vadd.f32 0.0, %v145
    %v147 = vpop.f32.mrb[0].mxu0
    %148 = vmatprep.mubr.f32.mxu0 0.0
    %149 = vmatmul.mubr.f32.gmra.mrb[0].mxu0 %v73
    %v150 = vpop.f32.mrb[0].mxu0
    %v151 = vadd.f32 0.0, %v150
    %v152 = vpop.f32.mrb[0].mxu0
    %153 = vdwg.mxu0
    %v154 = vld [vmem:[%s2] sm:$0xff]
    %v155 = vld [vmem:[%s2 + $0x8] sm:$0xff]
    %v156 = vld [vmem:[%s2 + $0x10] sm:$0xff]
    %v157 = vld [vmem:[%s2 + $0x18] sm:$0xff]
    %v158 = vld [vmem:[%s4] sm:$0x1]
    %v160 = vlaneseq
    %v161 = vshrl.u32 %v160, 7
    %v162 = vsub.s32 0, %v161
    %v163 = vrot.slane %v158, %v162
    %vm165 = vcmask 261120
    %v167 = vsel %vm165, %v146, 0
    %v170 = vsel %vm165, %v151, 0
    %172 = vmatprep.subr.mxu0 0.0
    %173 = vmatpush1.msra.mxu0 %v154
    %174 = vmatprep.subr.mxu0 0.0
    %175 = vmatpush1.msra.mxu0 %v155
    %176 = vmatprep.subr.mxu0 0.0
    %177 = vmatpush1.msra.mxu0 %v156
    %178 = vmatprep.subr.mxu0 0.0
    %179 = vmatpush1.msra.mxu0 %v157
    %180 = vmatprep.subr.mxu0 0.0
    %181 = vmatpush1.msra.mxu0 0.0
    %182 = vmatprep.subr.mxu0 0.0
    %183 = vmatpush1.msra.mxu0 0.0
    %184 = vmatprep.subr.mxu0 0.0
    %185 = vmatpush1.msra.mxu0 0.0
    %186 = vmatprep.subr.mxu0 0.0
    %187 = vmatpush1.msra.mxu0 0.0
    %188 = vmatprep.subr.mxu0 0.0
    %189 = vmatpush1.msra.mxu0 0.0
    %190 = vmatprep.subr.mxu0 0.0
    %191 = vmatpush1.msra.mxu0 0.0
    %192 = vmatprep.subr.mxu0 0.0
    %193 = vmatpush1.msra.mxu0 0.0
    %194 = vmatprep.subr.mxu0 0.0
    %195 = vmatpush1.msra.mxu0 0.0
    %196 = vmatprep.subr.mxu0 0.0
    %197 = vmatpush1.msra.mxu0 0.0
    %198 = vmatprep.subr.mxu0 0.0
    %199 = vmatpush1.msra.mxu0 0.0
    %200 = vmatprep.subr.mxu0 0.0
    %201 = vmatpush1.msra.mxu0 0.0
    %202 = vmatprep.subr.mxu0 0.0
    %203 = vmatpush1.msra.mxu0 0.0
    %204 = vmatprep.subr.mxu0 0.0
    %205 = vmatpush1.msra.mxu0 0.0
    %206 = vmatprep.subr.mxu0 0.0
    %207 = vmatpush1.msra.mxu0 0.0
    %208 = vmatprep.subr.mxu0 0.0
    %209 = vmatpush1.msra.mxu0 0.0
    %210 = vmatprep.subr.mxu0 0.0
    %211 = vmatpush1.msra.mxu0 0.0
    %212 = vmatprep.subr.mxu0 0.0
    %213 = vmatpush1.msra.mxu0 0.0
    %214 = vmatprep.subr.mxu0 0.0
    %215 = vmatpush1.msra.mxu0 0.0
    %216 = vmatprep.subr.mxu0 0.0
    %217 = vmatpush1.msra.mxu0 0.0
    %218 = vmatprep.subr.mxu0 0.0
    %219 = vmatpush1.msra.mxu0 0.0
    %220 = vmatprep.subr.mxu0 0.0
    %221 = vmatpush1.msra.mxu0 0.0
    %222 = vmatprep.subr.mxu0 0.0
    %223 = vmatpush1.msra.mxu0 0.0
    %224 = vmatprep.subr.mxu0 0.0
    %225 = vmatpush1.msra.mxu0 0.0
    %226 = vmatprep.subr.mxu0 0.0
    %227 = vmatpush1.msra.mxu0 0.0
    %228 = vmatprep.subr.mxu0 0.0
    %229 = vmatpush1.msra.mxu0 0.0
    %230 = vmatprep.subr.mxu0 0.0
    %231 = vmatpush1.msra.mxu0 0.0
    %232 = vmatprep.subr.mxu0 0.0
    %233 = vmatpush1.msra.mxu0 0.0
    %234 = vmatprep.subr.mxu0 0.0
    %235 = vmatpush1.msra.mxu0 0.0
    %236 = vmatprep.mubr.f32.mxu0 0.0
    %237 = vmatmul.mubr.f32.gmra.mrb[0].mxu0 %v167
    %v238 = vpop.f32.mrb[0].mxu0
    %v239 = vadd.f32 %v163, %v238
    %v240 = vpop.f32.mrb[0].mxu0
    %241 = vmatprep.mubr.f32.mxu0 0.0
    %242 = vmatmul.mubr.f32.gmra.mrb[0].mxu0 %v170
    %v243 = vpop.f32.mrb[0].mxu0
    %v244 = vadd.f32 %v163, %v243
    %v245 = vpop.f32.mrb[0].mxu0
    %246 = vdwg.mxu0
    %v247 = vld [vmem:[#allocation2] sm:$0xff]
    %v248 = vld [vmem:[#allocation2 + $0x8] sm:$0xff]
    %v249 = vld [vmem:[#allocation2 + $0x10] sm:$0xff]
    %v250 = vld [vmem:[#allocation2 + $0x18] sm:$0xff]
    %v251 = vld [vmem:[%s5] sm:$0xff]
    %v252 = vld [vmem:[%s5 + $0x8] sm:$0xff]
    %v253 = vld [vmem:[%s5 + $0x10] sm:$0xff]
    %v254 = vld [vmem:[%s5 + $0x18] sm:$0xff]
    %v255 = vld [vmem:[%s5 + $0x20] sm:$0xff]
    %v256 = vld [vmem:[%s5 + $0x28] sm:$0xff]
    %v257 = vld [vmem:[%s5 + $0x30] sm:$0xff]
    %v258 = vld [vmem:[%s5 + $0x38] sm:$0xff]
    %v259 = vld [vmem:[%s6] sm:$0x1]
    %v261 = vsel %vm165, 0.0, 0
    %263 = vmatprep.subr.mxu0 0.0
    %264 = vmatpush1.msra.mxu0 %v247
    %265 = vmatprep.subr.mxu0 0.0
    %266 = vmatpush1.msra.mxu0 %v248
    %267 = vmatprep.subr.mxu0 0.0
    %268 = vmatpush1.msra.mxu0 %v249
    %269 = vmatprep.subr.mxu0 0.0
    %270 = vmatpush1.msra.mxu0 %v250
    %271 = vmatprep.subr.mxu0 0.0
    %272 = vmatpush1.msra.mxu0 0.0
    %273 = vmatprep.subr.mxu0 0.0
    %274 = vmatpush1.msra.mxu0 0.0
    %275 = vmatprep.subr.mxu0 0.0
    %276 = vmatpush1.msra.mxu0 0.0
    %277 = vmatprep.subr.mxu0 0.0
    %278 = vmatpush1.msra.mxu0 0.0
    %279 = vmatprep.subr.mxu0 0.0
    %280 = vmatpush1.msra.mxu0 0.0
    %281 = vmatprep.subr.mxu0 0.0
    %282 = vmatpush1.msra.mxu0 0.0
    %283 = vmatprep.subr.mxu0 0.0
    %284 = vmatpush1.msra.mxu0 0.0
    %285 = vmatprep.subr.mxu0 0.0
    %286 = vmatpush1.msra.mxu0 0.0
    %287 = vmatprep.subr.mxu0 0.0
    %288 = vmatpush1.msra.mxu0 0.0
    %289 = vmatprep.subr.mxu0 0.0
    %290 = vmatpush1.msra.mxu0 0.0
    %291 = vmatprep.subr.mxu0 0.0
    %292 = vmatpush1.msra.mxu0 0.0
    %293 = vmatprep.subr.mxu0 0.0
    %294 = vmatpush1.msra.mxu0 0.0
    %295 = vmatprep.subr.mxu0 0.0
    %296 = vmatpush1.msra.mxu0 0.0
    %297 = vmatprep.subr.mxu0 0.0
    %298 = vmatpush1.msra.mxu0 0.0
    %299 = vmatprep.subr.mxu0 0.0
    %300 = vmatpush1.msra.mxu0 0.0
    %301 = vmatprep.subr.mxu0 0.0
    %302 = vmatpush1.msra.mxu0 0.0
    %303 = vmatprep.subr.mxu0 0.0
    %304 = vmatpush1.msra.mxu0 0.0
    %305 = vmatprep.subr.mxu0 0.0
    %306 = vmatpush1.msra.mxu0 0.0
    %307 = vmatprep.subr.mxu0 0.0
    %308 = vmatpush1.msra.mxu0 0.0
    %309 = vmatprep.subr.mxu0 0.0
    %310 = vmatpush1.msra.mxu0 0.0
    %311 = vmatprep.subr.mxu0 0.0
    %312 = vmatpush1.msra.mxu0 0.0
    %313 = vmatprep.subr.mxu0 0.0
    %314 = vmatpush1.msra.mxu0 0.0
    %315 = vmatprep.subr.mxu0 0.0
    %316 = vmatpush1.msra.mxu0 0.0
    %317 = vmatprep.subr.mxu0 0.0
    %318 = vmatpush1.msra.mxu0 0.0
    %319 = vmatprep.subr.mxu0 0.0
    %320 = vmatpush1.msra.mxu0 0.0
    %321 = vmatprep.subr.mxu0 0.0
    %322 = vmatpush1.msra.mxu0 0.0
    %323 = vmatprep.subr.mxu0 0.0
    %324 = vmatpush1.msra.mxu0 0.0
    %325 = vmatprep.subr.mxu0 0.0
    %326 = vmatpush1.msra.mxu0 0.0
    %327 = vmatprep.mubr.f32.mxu0 0.0
    %328 = vmatmul.mubr.f32.gmra.mrb[0].mxu0 %v261
    %v329 = vpop.f32.mrb[0].mxu0
    %v330 = vadd.f32 0.0, %v329
    %v331 = vpop.f32.mrb[0].mxu0
    %332 = vdwg.mxu0
    %v333 = vadd.f32 %v239, %v330
    %vm334 = vcmp.ge.s32.totalorder %v50, 64
    %vm335 = vcmp.lt.s32.totalorder %v50, 96
    %vm336 = vmand %vm334, %vm335
    %v337 = vtanh.pop %v333
    %v338 = vxor.u32 %v333, 2147483648
    %v339 = vmul.f32 %v338, 1.442695
    %v340 = vpow.pop %v339
    %v341 = vadd.f32 %v340, 1.0
    %v342 = vrcp.pop %v341
    %v343 = vmul.f32 1.0, %v342
    %v344 = vsel %vm336, %v337, %v343
    %v345 = vmul.f32 %v344, 0.0
    %347 = vrot.lane.b32.xlu0 %v344, 64
    %v348 = vpop.permute.xlu0 %347
    %v350 = vmul.f32 %v344, %v348
    %352 = vrot.lane.b32.xlu0 %v350, 32
    %v353 = vpop.permute.xlu0 %352
    %v355 = vadd.f32 %v345, %v353
    %v356 = vtanh.pop %v355
    %358 = vrot.lane.b32.xlu0 %v356, 64
    %v359 = vpop.permute.xlu0 %358
    %v361 = vmul.f32 %v344, %v359
    %363 = vrot.lane.b32.xlu0 %v361, 32
    %v364 = vpop.permute.xlu0 %363
    %v366 = vsel %vm165, %v364, 0.0
    %v368 = vlaneseq
    %v369 = vshrl.u32 %v368, 7
    %v370 = vsub.s32 0, %v369
    %v371 = vrot.slane %v259, %v370
    %vm373 = vcmask 523264
    %v375 = vsel %vm373, %v366, 0
    %377 = vmatprep.subr.mxu0 0.0
    %378 = vmatpush1.msra.mxu0 %v251
    %379 = vmatprep.subr.mxu0 0.0
    %380 = vmatpush1.msra.mxu0 %v252
    %381 = vmatprep.subr.mxu0 0.0
    %382 = vmatpush1.msra.mxu0 %v253
    %383 = vmatprep.subr.mxu0 0.0
    %384 = vmatpush1.msra.mxu0 %v254
    %385 = vmatprep.subr.mxu0 0.0
    %386 = vmatpush1.msra.mxu0 %v255
    %387 = vmatprep.subr.mxu0 0.0
    %388 = vmatpush1.msra.mxu0 %v256
    %389 = vmatprep.subr.mxu0 0.0
    %390 = vmatpush1.msra.mxu0 %v257
    %391 = vmatprep.subr.mxu0 0.0
    %392 = vmatpush1.msra.mxu0 %v258
    %393 = vmatprep.subr.mxu0 0.0
    %394 = vmatpush1.msra.mxu0 0.0
    %395 = vmatprep.subr.mxu0 0.0
    %396 = vmatpush1.msra.mxu0 0.0
    %397 = vmatprep.subr.mxu0 0.0
    %398 = vmatpush1.msra.mxu0 0.0
    %399 = vmatprep.subr.mxu0 0.0
    %400 = vmatpush1.msra.mxu0 0.0
    %401 = vmatprep.subr.mxu0 0.0
    %402 = vmatpush1.msra.mxu0 0.0
    %403 = vmatprep.subr.mxu0 0.0
    %404 = vmatpush1.msra.mxu0 0.0
    %405 = vmatprep.subr.mxu0 0.0
    %406 = vmatpush1.msra.mxu0 0.0
    %407 = vmatprep.subr.mxu0 0.0
    %408 = vmatpush1.msra.mxu0 0.0
    %409 = vmatprep.subr.mxu0 0.0
    %410 = vmatpush1.msra.mxu0 0.0
    %411 = vmatprep.subr.mxu0 0.0
    %412 = vmatpush1.msra.mxu0 0.0
    %413 = vmatprep.subr.mxu0 0.0
    %414 = vmatpush1.msra.mxu0 0.0
    %415 = vmatprep.subr.mxu0 0.0
    %416 = vmatpush1.msra.mxu0 0.0
    %417 = vmatprep.subr.mxu0 0.0
    %418 = vmatpush1.msra.mxu0 0.0
    %419 = vmatprep.subr.mxu0 0.0
    %420 = vmatpush1.msra.mxu0 0.0
    %421 = vmatprep.subr.mxu0 0.0
    %422 = vmatpush1.msra.mxu0 0.0
    %423 = vmatprep.subr.mxu0 0.0
    %424 = vmatpush1.msra.mxu0 0.0
    %425 = vmatprep.subr.mxu0 0.0
    %426 = vmatpush1.msra.mxu0 0.0
    %427 = vmatprep.subr.mxu0 0.0
    %428 = vmatpush1.msra.mxu0 0.0
    %429 = vmatprep.subr.mxu0 0.0
    %430 = vmatpush1.msra.mxu0 0.0
    %431 = vmatprep.subr.mxu0 0.0
    %432 = vmatpush1.msra.mxu0 0.0
    %433 = vmatprep.subr.mxu0 0.0
    %434 = vmatpush1.msra.mxu0 0.0
    %435 = vmatprep.subr.mxu0 0.0
    %436 = vmatpush1.msra.mxu0 0.0
    %437 = vmatprep.subr.mxu0 0.0
    %438 = vmatpush1.msra.mxu0 0.0
    %439 = vmatprep.subr.mxu0 0.0
    %440 = vmatpush1.msra.mxu0 0.0
    %441 = vmatprep.mubr.f32.mxu0 0.0
    %442 = vmatmul.mubr.f32.gmra.mrb[0].mxu0 %v375
    %v443 = vpop.f32.mrb[0].mxu0
    %v444 = vadd.f32 %v371, %v443
    %v445 = vpop.f32.mrb[0].mxu0
    %446 = vdwg.mxu0
    %v447 = vtanh.pop %v444
    %v448 = vxor.u32 %v444, 2147483648
    %v449 = vmul.f32 %v448, 1.442695
    %v450 = vpow.pop %v449
    %v451 = vadd.f32 %v450, 1.0
    %v452 = vrcp.pop %v451
    %v453 = vmul.f32 1.0, %v452
    %v454 = vsel %vm336, %v447, %v453
    %v455 = vmul.f32 %v454, 0.0
    %457 = vrot.lane.b32.xlu0 %v454, 64
    %v458 = vpop.permute.xlu0 %457
    %v460 = vmul.f32 %v454, %v458
    %462 = vrot.lane.b32.xlu0 %v460, 32
    %v463 = vpop.permute.xlu0 %462
    %v465 = vadd.f32 %v455, %v463
    %v466 = vtanh.pop %v465
    %468 = vrot.lane.b32.xlu0 %v466, 64
    %v469 = vpop.permute.xlu0 %468
    %v471 = vmul.f32 %v454, %v469
    %v472 = vsel %vm165, %v364, 0
    %474 = vmatprep.subr.mxu0 0.0
    %475 = vmatpush1.msra.mxu0 %v247
    %476 = vmatprep.subr.mxu0 0.0
    %477 = vmatpush1.msra.mxu0 %v248
    %478 = vmatprep.subr.mxu0 0.0
    %479 = vmatpush1.msra.mxu0 %v249
    %480 = vmatprep.subr.mxu0 0.0
    %481 = vmatpush1.msra.mxu0 %v250
    %482 = vmatprep.subr.mxu0 0.0
    %483 = vmatpush1.msra.mxu0 0.0
    %484 = vmatprep.subr.mxu0 0.0
    %485 = vmatpush1.msra.mxu0 0.0
    %486 = vmatprep.subr.mxu0 0.0
    %487 = vmatpush1.msra.mxu0 0.0
    %488 = vmatprep.subr.mxu0 0.0
    %489 = vmatpush1.msra.mxu0 0.0
    %490 = vmatprep.subr.mxu0 0.0
    %491 = vmatpush1.msra.mxu0 0.0
    %492 = vmatprep.subr.mxu0 0.0
    %493 = vmatpush1.msra.mxu0 0.0
    %494 = vmatprep.subr.mxu0 0.0
    %495 = vmatpush1.msra.mxu0 0.0
    %496 = vmatprep.subr.mxu0 0.0
    %497 = vmatpush1.msra.mxu0 0.0
    %498 = vmatprep.subr.mxu0 0.0
    %499 = vmatpush1.msra.mxu0 0.0
    %500 = vmatprep.subr.mxu0 0.0
    %501 = vmatpush1.msra.mxu0 0.0
    %502 = vmatprep.subr.mxu0 0.0
    %503 = vmatpush1.msra.mxu0 0.0
    %504 = vmatprep.subr.mxu0 0.0
    %505 = vmatpush1.msra.mxu0 0.0
    %506 = vmatprep.subr.mxu0 0.0
    %507 = vmatpush1.msra.mxu0 0.0
    %508 = vmatprep.subr.mxu0 0.0
    %509 = vmatpush1.msra.mxu0 0.0
    %510 = vmatprep.subr.mxu0 0.0
    %511 = vmatpush1.msra.mxu0 0.0
    %512 = vmatprep.subr.mxu0 0.0
    %513 = vmatpush1.msra.mxu0 0.0
    %514 = vmatprep.subr.mxu0 0.0
    %515 = vmatpush1.msra.mxu0 0.0
    %516 = vmatprep.subr.mxu0 0.0
    %517 = vmatpush1.msra.mxu0 0.0
    %518 = vmatprep.subr.mxu0 0.0
    %519 = vmatpush1.msra.mxu0 0.0
    %520 = vmatprep.subr.mxu0 0.0
    %521 = vmatpush1.msra.mxu0 0.0
    %522 = vmatprep.subr.mxu0 0.0
    %523 = vmatpush1.msra.mxu0 0.0
    %524 = vmatprep.subr.mxu0 0.0
    %525 = vmatpush1.msra.mxu0 0.0
    %526 = vmatprep.subr.mxu0 0.0
    %527 = vmatpush1.msra.mxu0 0.0
    %528 = vmatprep.subr.mxu0 0.0
    %529 = vmatpush1.msra.mxu0 0.0
    %530 = vmatprep.subr.mxu0 0.0
    %531 = vmatpush1.msra.mxu0 0.0
    %532 = vmatprep.subr.mxu0 0.0
    %533 = vmatpush1.msra.mxu0 0.0
    %534 = vmatprep.subr.mxu0 0.0
    %535 = vmatpush1.msra.mxu0 0.0
    %536 = vmatprep.subr.mxu0 0.0
    %537 = vmatpush1.msra.mxu0 0.0
    %538 = vmatprep.mubr.f32.mxu0 0.0
    %539 = vmatmul.mubr.f32.gmra.mrb[0].mxu0 %v472
    %v540 = vpop.f32.mrb[0].mxu0
    %v541 = vadd.f32 0.0, %v540
    %v542 = vpop.f32.mrb[0].mxu0
    %543 = vdwg.mxu0
    %v545 = vrot.slane %v541, 6
    %v547 = vadd.f32 %v239, %v545
    %v548 = vtanh.pop %v547
    %v549 = vxor.u32 %v547, 2147483648
    %v550 = vmul.f32 %v549, 1.442695
    %v551 = vpow.pop %v550
    %v552 = vadd.f32 %v551, 1.0
    %v553 = vrcp.pop %v552
    %v554 = vmul.f32 1.0, %v553
    %v555 = vsel %vm336, %v548, %v554
    %v557 = vrot.slane %v355, 6
    %v559 = vmul.f32 %v555, %v557
    %561 = vrot.lane.b32.xlu0 %v555, 64
    %v562 = vpop.permute.xlu0 %561
    %v564 = vmul.f32 %v555, %v562
    %566 = vrot.lane.b32.xlu0 %v564, 32
    %v567 = vpop.permute.xlu0 %566
    %v569 = vadd.f32 %v559, %v567
    %v570 = vtanh.pop %v569
    %572 = vrot.lane.b32.xlu0 %v570, 64
    %v573 = vpop.permute.xlu0 %572
    %v575 = vmul.f32 %v555, %v573
    %577 = vrot.lane.b32.xlu0 %v575, 32
    %v578 = vpop.permute.xlu0 %577
    %v581 = vrot.slane %v471, 6
    %582 = vrot.lane.b32.xlu0 %v581, 64
    %v583 = vpop.permute.xlu0 %582
    %v585 = vsel %vm165, %v578, %v583
    %v587 = vrot.slane %v585, 2
    %v588 = vsel %vm373, %v587, 0
    %590 = vmatprep.subr.mxu0 0.0
    %591 = vmatpush1.msra.mxu0 %v251
    %592 = vmatprep.subr.mxu0 0.0
    %593 = vmatpush1.msra.mxu0 %v252
    %594 = vmatprep.subr.mxu0 0.0
    %595 = vmatpush1.msra.mxu0 %v253
    %596 = vmatprep.subr.mxu0 0.0
    %597 = vmatpush1.msra.mxu0 %v254
    %598 = vmatprep.subr.mxu0 0.0
    %599 = vmatpush1.msra.mxu0 %v255
    %600 = vmatprep.subr.mxu0 0.0
    %601 = vmatpush1.msra.mxu0 %v256
    %602 = vmatprep.subr.mxu0 0.0
    %603 = vmatpush1.msra.mxu0 %v257
    %604 = vmatprep.subr.mxu0 0.0
    %605 = vmatpush1.msra.mxu0 %v258
    %606 = vmatprep.subr.mxu0 0.0
    %607 = vmatpush1.msra.mxu0 0.0
    %608 = vmatprep.subr.mxu0 0.0
    %609 = vmatpush1.msra.mxu0 0.0
    %610 = vmatprep.subr.mxu0 0.0
    %611 = vmatpush1.msra.mxu0 0.0
    %612 = vmatprep.subr.mxu0 0.0
    %613 = vmatpush1.msra.mxu0 0.0
    %614 = vmatprep.subr.mxu0 0.0
    %615 = vmatpush1.msra.mxu0 0.0
    %616 = vmatprep.subr.mxu0 0.0
    %617 = vmatpush1.msra.mxu0 0.0
    %618 = vmatprep.subr.mxu0 0.0
    %619 = vmatpush1.msra.mxu0 0.0
    %620 = vmatprep.subr.mxu0 0.0
    %621 = vmatpush1.msra.mxu0 0.0
    %622 = vmatprep.subr.mxu0 0.0
    %623 = vmatpush1.msra.mxu0 0.0
    %624 = vmatprep.subr.mxu0 0.0
    %625 = vmatpush1.msra.mxu0 0.0
    %626 = vmatprep.subr.mxu0 0.0
    %627 = vmatpush1.msra.mxu0 0.0
    %628 = vmatprep.subr.mxu0 0.0
    %629 = vmatpush1.msra.mxu0 0.0
    %630 = vmatprep.subr.mxu0 0.0
    %631 = vmatpush1.msra.mxu0 0.0
    %632 = vmatprep.subr.mxu0 0.0
    %633 = vmatpush1.msra.mxu0 0.0
    %634 = vmatprep.subr.mxu0 0.0
    %635 = vmatpush1.msra.mxu0 0.0
    %636 = vmatprep.subr.mxu0 0.0
    %637 = vmatpush1.msra.mxu0 0.0
    %638 = vmatprep.subr.mxu0 0.0
    %639 = vmatpush1.msra.mxu0 0.0
    %640 = vmatprep.subr.mxu0 0.0
    %641 = vmatpush1.msra.mxu0 0.0
    %642 = vmatprep.subr.mxu0 0.0
    %643 = vmatpush1.msra.mxu0 0.0
    %644 = vmatprep.subr.mxu0 0.0
    %645 = vmatpush1.msra.mxu0 0.0
    %646 = vmatprep.subr.mxu0 0.0
    %647 = vmatpush1.msra.mxu0 0.0
    %648 = vmatprep.subr.mxu0 0.0
    %649 = vmatpush1.msra.mxu0 0.0
    %650 = vmatprep.subr.mxu0 0.0
    %651 = vmatpush1.msra.mxu0 0.0
    %652 = vmatprep.subr.mxu0 0.0
    %653 = vmatpush1.msra.mxu0 0.0
    %654 = vmatprep.mubr.f32.mxu0 0.0
    %655 = vmatmul.mubr.f32.gmra.mrb[0].mxu0 %v588
    %v656 = vpop.f32.mrb[0].mxu0
    %v657 = vadd.f32 %v371, %v656
    %v658 = vpop.f32.mrb[0].mxu0
    %659 = vdwg.mxu0
    %v660 = vtanh.pop %v657
    %v661 = vxor.u32 %v657, 2147483648
    %v662 = vmul.f32 %v661, 1.442695
    %v663 = vpow.pop %v662
    %v664 = vadd.f32 %v663, 1.0
    %v665 = vrcp.pop %v664
    %v666 = vmul.f32 1.0, %v665
    %v667 = vsel %vm336, %v660, %v666
    %v668 = vmul.f32 %v667, %v465
    %670 = vrot.lane.b32.xlu0 %v667, 64
    %v671 = vpop.permute.xlu0 %670
    %v673 = vmul.f32 %v667, %v671
    %675 = vrot.lane.b32.xlu0 %v673, 32
    %v676 = vpop.permute.xlu0 %675
    %v678 = vadd.f32 %v668, %v676
    %v679 = vtanh.pop %v678
    %681 = vrot.lane.b32.xlu0 %v679, 64
    %v682 = vpop.permute.xlu0 %681
    %v684 = vmul.f32 %v667, %v682
    %v685 = vrot.slane %v575, 2
    %686 = vrot.lane.b32.xlu0 %v685, 32
    %v687 = vpop.permute.xlu0 %686
    %v688 = vsel %vm165, %v687, 0
    %690 = vmatprep.subr.mxu0 0.0
    %691 = vmatpush1.msra.mxu0 %v247
    %692 = vmatprep.subr.mxu0 0.0
    %693 = vmatpush1.msra.mxu0 %v248
    %694 = vmatprep.subr.mxu0 0.0
    %695 = vmatpush1.msra.mxu0 %v249
    %696 = vmatprep.subr.mxu0 0.0
    %697 = vmatpush1.msra.mxu0 %v250
    %698 = vmatprep.subr.mxu0 0.0
    %699 = vmatpush1.msra.mxu0 0.0
    %700 = vmatprep.subr.mxu0 0.0
    %701 = vmatpush1.msra.mxu0 0.0
    %702 = vmatprep.subr.mxu0 0.0
    %703 = vmatpush1.msra.mxu0 0.0
    %704 = vmatprep.subr.mxu0 0.0
    %705 = vmatpush1.msra.mxu0 0.0
    %706 = vmatprep.subr.mxu0 0.0
    %707 = vmatpush1.msra.mxu0 0.0
    %708 = vmatprep.subr.mxu0 0.0
    %709 = vmatpush1.msra.mxu0 0.0
    %710 = vmatprep.subr.mxu0 0.0
    %711 = vmatpush1.msra.mxu0 0.0
    %712 = vmatprep.subr.mxu0 0.0
    %713 = vmatpush1.msra.mxu0 0.0
    %714 = vmatprep.subr.mxu0 0.0
    %715 = vmatpush1.msra.mxu0 0.0
    %716 = vmatprep.subr.mxu0 0.0
    %717 = vmatpush1.msra.mxu0 0.0
    %718 = vmatprep.subr.mxu0 0.0
    %719 = vmatpush1.msra.mxu0 0.0
    %720 = vmatprep.subr.mxu0 0.0
    %721 = vmatpush1.msra.mxu0 0.0
    %722 = vmatprep.subr.mxu0 0.0
    %723 = vmatpush1.msra.mxu0 0.0
    %724 = vmatprep.subr.mxu0 0.0
    %725 = vmatpush1.msra.mxu0 0.0
    %726 = vmatprep.subr.mxu0 0.0
    %727 = vmatpush1.msra.mxu0 0.0
    %728 = vmatprep.subr.mxu0 0.0
    %729 = vmatpush1.msra.mxu0 0.0
    %730 = vmatprep.subr.mxu0 0.0
    %731 = vmatpush1.msra.mxu0 0.0
    %732 = vmatprep.subr.mxu0 0.0
    %733 = vmatpush1.msra.mxu0 0.0
    %734 = vmatprep.subr.mxu0 0.0
    %735 = vmatpush1.msra.mxu0 0.0
    %736 = vmatprep.subr.mxu0 0.0
    %737 = vmatpush1.msra.mxu0 0.0
    %738 = vmatprep.subr.mxu0 0.0
    %739 = vmatpush1.msra.mxu0 0.0
    %740 = vmatprep.subr.mxu0 0.0
    %741 = vmatpush1.msra.mxu0 0.0
    %742 = vmatprep.subr.mxu0 0.0
    %743 = vmatpush1.msra.mxu0 0.0
    %744 = vmatprep.subr.mxu0 0.0
    %745 = vmatpush1.msra.mxu0 0.0
    %746 = vmatprep.subr.mxu0 0.0
    %747 = vmatpush1.msra.mxu0 0.0
    %748 = vmatprep.subr.mxu0 0.0
    %749 = vmatpush1.msra.mxu0 0.0
    %750 = vmatprep.subr.mxu0 0.0
    %751 = vmatpush1.msra.mxu0 0.0
    %752 = vmatprep.subr.mxu0 0.0
    %753 = vmatpush1.msra.mxu0 0.0
    %754 = vmatprep.mubr.f32.mxu0 0.0
    %755 = vmatmul.mubr.f32.gmra.mrb[0].mxu0 %v688
    %v756 = vpop.f32.mrb[0].mxu0
    %v757 = vadd.f32 0.0, %v756
    %v758 = vpop.f32.mrb[0].mxu0
    %759 = vdwg.mxu0
    %v761 = vrot.slane %v757, 4
    %v763 = vadd.f32 %v239, %v761
    %v764 = vtanh.pop %v763
    %v765 = vxor.u32 %v763, 2147483648
    %v766 = vmul.f32 %v765, 1.442695
    %v767 = vpow.pop %v766
    %v768 = vadd.f32 %v767, 1.0
    %v769 = vrcp.pop %v768
    %v770 = vmul.f32 1.0, %v769
    %v771 = vsel %vm336, %v764, %v770
    %v773 = vrot.slane %v569, 6
    %v775 = vmul.f32 %v771, %v773
    %777 = vrot.lane.b32.xlu0 %v771, 64
    %v778 = vpop.permute.xlu0 %777
    %v780 = vmul.f32 %v771, %v778
    %782 = vrot.lane.b32.xlu0 %v780, 32
    %v783 = vpop.permute.xlu0 %782
    %v785 = vadd.f32 %v775, %v783
    %v786 = vtanh.pop %v785
    %788 = vrot.lane.b32.xlu0 %v786, 64
    %v789 = vpop.permute.xlu0 %788
    %v791 = vmul.f32 %v771, %v789
    %793 = vrot.lane.b32.xlu0 %v791, 32
    %v794 = vpop.permute.xlu0 %793
    %v797 = vrot.slane %v684, 4
    %798 = vrot.lane.b32.xlu0 %v797, 64
    %v799 = vpop.permute.xlu0 %798
    %v801 = vsel %vm165, %v794, %v799
    %v803 = vrot.slane %v801, 4
    %v804 = vsel %vm373, %v803, 0
    %806 = vmatprep.subr.mxu0 0.0
    %807 = vmatpush1.msra.mxu0 %v251
    %808 = vmatprep.subr.mxu0 0.0
    %809 = vmatpush1.msra.mxu0 %v252
    %810 = vmatprep.subr.mxu0 0.0
    %811 = vmatpush1.msra.mxu0 %v253
    %812 = vmatprep.subr.mxu0 0.0
    %813 = vmatpush1.msra.mxu0 %v254
    %814 = vmatprep.subr.mxu0 0.0
    %815 = vmatpush1.msra.mxu0 %v255
    %816 = vmatprep.subr.mxu0 0.0
    %817 = vmatpush1.msra.mxu0 %v256
    %818 = vmatprep.subr.mxu0 0.0
    %819 = vmatpush1.msra.mxu0 %v257
    %820 = vmatprep.subr.mxu0 0.0
    %821 = vmatpush1.msra.mxu0 %v258
    %822 = vmatprep.subr.mxu0 0.0
    %823 = vmatpush1.msra.mxu0 0.0
    %824 = vmatprep.subr.mxu0 0.0
    %825 = vmatpush1.msra.mxu0 0.0
    %826 = vmatprep.subr.mxu0 0.0
    %827 = vmatpush1.msra.mxu0 0.0
    %828 = vmatprep.subr.mxu0 0.0
    %829 = vmatpush1.msra.mxu0 0.0
    %830 = vmatprep.subr.mxu0 0.0
    %831 = vmatpush1.msra.mxu0 0.0
    %832 = vmatprep.subr.mxu0 0.0
    %833 = vmatpush1.msra.mxu0 0.0
    %834 = vmatprep.subr.mxu0 0.0
    %835 = vmatpush1.msra.mxu0 0.0
    %836 = vmatprep.subr.mxu0 0.0
    %837 = vmatpush1.msra.mxu0 0.0
    %838 = vmatprep.subr.mxu0 0.0
    %839 = vmatpush1.msra.mxu0 0.0
    %840 = vmatprep.subr.mxu0 0.0
    %841 = vmatpush1.msra.mxu0 0.0
    %842 = vmatprep.subr.mxu0 0.0
    %843 = vmatpush1.msra.mxu0 0.0
    %844 = vmatprep.subr.mxu0 0.0
    %845 = vmatpush1.msra.mxu0 0.0
    %846 = vmatprep.subr.mxu0 0.0
    %847 = vmatpush1.msra.mxu0 0.0
    %848 = vmatprep.subr.mxu0 0.0
    %849 = vmatpush1.msra.mxu0 0.0
    %850 = vmatprep.subr.mxu0 0.0
    %851 = vmatpush1.msra.mxu0 0.0
    %852 = vmatprep.subr.mxu0 0.0
    %853 = vmatpush1.msra.mxu0 0.0
    %854 = vmatprep.subr.mxu0 0.0
    %855 = vmatpush1.msra.mxu0 0.0
    %856 = vmatprep.subr.mxu0 0.0
    %857 = vmatpush1.msra.mxu0 0.0
    %858 = vmatprep.subr.mxu0 0.0
    %859 = vmatpush1.msra.mxu0 0.0
    %860 = vmatprep.subr.mxu0 0.0
    %861 = vmatpush1.msra.mxu0 0.0
    %862 = vmatprep.subr.mxu0 0.0
    %863 = vmatpush1.msra.mxu0 0.0
    %864 = vmatprep.subr.mxu0 0.0
    %865 = vmatpush1.msra.mxu0 0.0
    %866 = vmatprep.subr.mxu0 0.0
    %867 = vmatpush1.msra.mxu0 0.0
    %868 = vmatprep.subr.mxu0 0.0
    %869 = vmatpush1.msra.mxu0 0.0
    %870 = vmatprep.mubr.f32.mxu0 0.0
    %871 = vmatmul.mubr.f32.gmra.mrb[0].mxu0 %v804
    %v872 = vpop.f32.mrb[0].mxu0
    %v873 = vadd.f32 %v371, %v872
    %v874 = vpop.f32.mrb[0].mxu0
    %875 = vdwg.mxu0
    %v876 = vtanh.pop %v873
    %v877 = vxor.u32 %v873, 2147483648
    %v878 = vmul.f32 %v877, 1.442695
    %v879 = vpow.pop %v878
    %v880 = vadd.f32 %v879, 1.0
    %v881 = vrcp.pop %v880
    %v882 = vmul.f32 1.0, %v881
    %v883 = vsel %vm336, %v876, %v882
    %v884 = vmul.f32 %v883, %v678
    %886 = vrot.lane.b32.xlu0 %v883, 64
    %v887 = vpop.permute.xlu0 %886
    %v889 = vmul.f32 %v883, %v887
    %891 = vrot.lane.b32.xlu0 %v889, 32
    %v892 = vpop.permute.xlu0 %891
    %v894 = vadd.f32 %v884, %v892
    %v895 = vtanh.pop %v894
    %897 = vrot.lane.b32.xlu0 %v895, 64
    %v898 = vpop.permute.xlu0 %897
    %v900 = vmul.f32 %v883, %v898
    %v901 = vrot.slane %v791, 4
    %902 = vrot.lane.b32.xlu0 %v901, 32
    %v903 = vpop.permute.xlu0 %902
    %v904 = vsel %vm165, %v903, 0
    %906 = vmatprep.subr.mxu0 0.0
    %907 = vmatpush1.msra.mxu0 %v247
    %908 = vmatprep.subr.mxu0 0.0
    %909 = vmatpush1.msra.mxu0 %v248
    %910 = vmatprep.subr.mxu0 0.0
    %911 = vmatpush1.msra.mxu0 %v249
    %912 = vmatprep.subr.mxu0 0.0
    %913 = vmatpush1.msra.mxu0 %v250
    %914 = vmatprep.subr.mxu0 0.0
    %915 = vmatpush1.msra.mxu0 0.0
    %916 = vmatprep.subr.mxu0 0.0
    %917 = vmatpush1.msra.mxu0 0.0
    %918 = vmatprep.subr.mxu0 0.0
    %919 = vmatpush1.msra.mxu0 0.0
    %920 = vmatprep.subr.mxu0 0.0
    %921 = vmatpush1.msra.mxu0 0.0
    %922 = vmatprep.subr.mxu0 0.0
    %923 = vmatpush1.msra.mxu0 0.0
    %924 = vmatprep.subr.mxu0 0.0
    %925 = vmatpush1.msra.mxu0 0.0
    %926 = vmatprep.subr.mxu0 0.0
    %927 = vmatpush1.msra.mxu0 0.0
    %928 = vmatprep.subr.mxu0 0.0
    %929 = vmatpush1.msra.mxu0 0.0
    %930 = vmatprep.subr.mxu0 0.0
    %931 = vmatpush1.msra.mxu0 0.0
    %932 = vmatprep.subr.mxu0 0.0
    %933 = vmatpush1.msra.mxu0 0.0
    %934 = vmatprep.subr.mxu0 0.0
    %935 = vmatpush1.msra.mxu0 0.0
    %936 = vmatprep.subr.mxu0 0.0
    %937 = vmatpush1.msra.mxu0 0.0
    %938 = vmatprep.subr.mxu0 0.0
    %939 = vmatpush1.msra.mxu0 0.0
    %940 = vmatprep.subr.mxu0 0.0
    %941 = vmatpush1.msra.mxu0 0.0
    %942 = vmatprep.subr.mxu0 0.0
    %943 = vmatpush1.msra.mxu0 0.0
    %944 = vmatprep.subr.mxu0 0.0
    %945 = vmatpush1.msra.mxu0 0.0
    %946 = vmatprep.subr.mxu0 0.0
    %947 = vmatpush1.msra.mxu0 0.0
    %948 = vmatprep.subr.mxu0 0.0
    %949 = vmatpush1.msra.mxu0 0.0
    %950 = vmatprep.subr.mxu0 0.0
    %951 = vmatpush1.msra.mxu0 0.0
    %952 = vmatprep.subr.mxu0 0.0
    %953 = vmatpush1.msra.mxu0 0.0
    %954 = vmatprep.subr.mxu0 0.0
    %955 = vmatpush1.msra.mxu0 0.0
    %956 = vmatprep.subr.mxu0 0.0
    %957 = vmatpush1.msra.mxu0 0.0
    %958 = vmatprep.subr.mxu0 0.0
    %959 = vmatpush1.msra.mxu0 0.0
    %960 = vmatprep.subr.mxu0 0.0
    %961 = vmatpush1.msra.mxu0 0.0
    %962 = vmatprep.subr.mxu0 0.0
    %963 = vmatpush1.msra.mxu0 0.0
    %964 = vmatprep.subr.mxu0 0.0
    %965 = vmatpush1.msra.mxu0 0.0
    %966 = vmatprep.subr.mxu0 0.0
    %967 = vmatpush1.msra.mxu0 0.0
    %968 = vmatprep.subr.mxu0 0.0
    %969 = vmatpush1.msra.mxu0 0.0
    %970 = vmatprep.mubr.f32.mxu0 0.0
    %971 = vmatmul.mubr.f32.gmra.mrb[0].mxu0 %v904
    %v972 = vpop.f32.mrb[0].mxu0
    %v973 = vadd.f32 0.0, %v972
    %v974 = vpop.f32.mrb[0].mxu0
    %975 = vdwg.mxu0
    %v977 = vrot.slane %v973, 2
    %v979 = vadd.f32 %v239, %v977
    %v980 = vtanh.pop %v979
    %v981 = vxor.u32 %v979, 2147483648
    %v982 = vmul.f32 %v981, 1.442695
    %v983 = vpow.pop %v982
    %v984 = vadd.f32 %v983, 1.0
    %v985 = vrcp.pop %v984
    %v986 = vmul.f32 1.0, %v985
    %v987 = vsel %vm336, %v980, %v986
    %v989 = vrot.slane %v785, 6
    %v991 = vmul.f32 %v987, %v989
    %993 = vrot.lane.b32.xlu0 %v987, 64
    %v994 = vpop.permute.xlu0 %993
    %v996 = vmul.f32 %v987, %v994
    %998 = vrot.lane.b32.xlu0 %v996, 32
    %v999 = vpop.permute.xlu0 %998
    %v1001 = vadd.f32 %v991, %v999
    %v1002 = vtanh.pop %v1001
    %1004 = vrot.lane.b32.xlu0 %v1002, 64
    %v1005 = vpop.permute.xlu0 %1004
    %v1007 = vmul.f32 %v987, %v1005
    %1009 = vrot.lane.b32.xlu0 %v1007, 32
    %v1010 = vpop.permute.xlu0 %1009
    %v1013 = vrot.slane %v900, 2
    %1014 = vrot.lane.b32.xlu0 %v1013, 64
    %v1015 = vpop.permute.xlu0 %1014
    %v1017 = vsel %vm165, %v1010, %v1015
    %v1019 = vrot.slane %v1017, 6
    %v1020 = vsel %vm373, %v1019, 0
    %1022 = vmatprep.subr.mxu0 0.0
    %1023 = vmatpush1.msra.mxu0 %v251
    %1024 = vmatprep.subr.mxu0 0.0
    %1025 = vmatpush1.msra.mxu0 %v252
    %1026 = vmatprep.subr.mxu0 0.0
    %1027 = vmatpush1.msra.mxu0 %v253
    %1028 = vmatprep.subr.mxu0 0.0
    %1029 = vmatpush1.msra.mxu0 %v254
    %1030 = vmatprep.subr.mxu0 0.0
    %1031 = vmatpush1.msra.mxu0 %v255
    %1032 = vmatprep.subr.mxu0 0.0
    %1033 = vmatpush1.msra.mxu0 %v256
    %1034 = vmatprep.subr.mxu0 0.0
    %1035 = vmatpush1.msra.mxu0 %v257
    %1036 = vmatprep.subr.mxu0 0.0
    %1037 = vmatpush1.msra.mxu0 %v258
    %1038 = vmatprep.subr.mxu0 0.0
    %1039 = vmatpush1.msra.mxu0 0.0
    %1040 = vmatprep.subr.mxu0 0.0
    %1041 = vmatpush1.msra.mxu0 0.0
    %1042 = vmatprep.subr.mxu0 0.0
    %1043 = vmatpush1.msra.mxu0 0.0
    %1044 = vmatprep.subr.mxu0 0.0
    %1045 = vmatpush1.msra.mxu0 0.0
    %1046 = vmatprep.subr.mxu0 0.0
    %1047 = vmatpush1.msra.mxu0 0.0
    %1048 = vmatprep.subr.mxu0 0.0
    %1049 = vmatpush1.msra.mxu0 0.0
    %1050 = vmatprep.subr.mxu0 0.0
    %1051 = vmatpush1.msra.mxu0 0.0
    %1052 = vmatprep.subr.mxu0 0.0
    %1053 = vmatpush1.msra.mxu0 0.0
    %1054 = vmatprep.subr.mxu0 0.0
    %1055 = vmatpush1.msra.mxu0 0.0
    %1056 = vmatprep.subr.mxu0 0.0
    %1057 = vmatpush1.msra.mxu0 0.0
    %1058 = vmatprep.subr.mxu0 0.0
    %1059 = vmatpush1.msra.mxu0 0.0
    %1060 = vmatprep.subr.mxu0 0.0
    %1061 = vmatpush1.msra.mxu0 0.0
    %1062 = vmatprep.subr.mxu0 0.0
    %1063 = vmatpush1.msra.mxu0 0.0
    %1064 = vmatprep.subr.mxu0 0.0
    %1065 = vmatpush1.msra.mxu0 0.0
    %1066 = vmatprep.subr.mxu0 0.0
    %1067 = vmatpush1.msra.mxu0 0.0
    %1068 = vmatprep.subr.mxu0 0.0
    %1069 = vmatpush1.msra.mxu0 0.0
    %1070 = vmatprep.subr.mxu0 0.0
    %1071 = vmatpush1.msra.mxu0 0.0
    %1072 = vmatprep.subr.mxu0 0.0
    %1073 = vmatpush1.msra.mxu0 0.0
    %1074 = vmatprep.subr.mxu0 0.0
    %1075 = vmatpush1.msra.mxu0 0.0
    %1076 = vmatprep.subr.mxu0 0.0
    %1077 = vmatpush1.msra.mxu0 0.0
    %1078 = vmatprep.subr.mxu0 0.0
    %1079 = vmatpush1.msra.mxu0 0.0
    %1080 = vmatprep.subr.mxu0 0.0
    %1081 = vmatpush1.msra.mxu0 0.0
    %1082 = vmatprep.subr.mxu0 0.0
    %1083 = vmatpush1.msra.mxu0 0.0
    %1084 = vmatprep.subr.mxu0 0.0
    %1085 = vmatpush1.msra.mxu0 0.0
    %1086 = vmatprep.mubr.f32.mxu0 0.0
    %1087 = vmatmul.mubr.f32.gmra.mrb[0].mxu0 %v1020
    %v1088 = vpop.f32.mrb[0].mxu0
    %v1089 = vadd.f32 %v371, %v1088
    %v1090 = vpop.f32.mrb[0].mxu0
    %1091 = vdwg.mxu0
    %v1092 = vtanh.pop %v1089
    %v1093 = vxor.u32 %v1089, 2147483648
    %v1094 = vmul.f32 %v1093, 1.442695
    %v1095 = vpow.pop %v1094
    %v1096 = vadd.f32 %v1095, 1.0
    %v1097 = vrcp.pop %v1096
    %v1098 = vmul.f32 1.0, %v1097
    %v1099 = vsel %vm336, %v1092, %v1098
    %v1100 = vmul.f32 %v1099, %v894
    %1102 = vrot.lane.b32.xlu0 %v1099, 64
    %v1103 = vpop.permute.xlu0 %1102
    %v1105 = vmul.f32 %v1099, %v1103
    %1107 = vrot.lane.b32.xlu0 %v1105, 32
    %v1108 = vpop.permute.xlu0 %1107
    %v1110 = vadd.f32 %v1100, %v1108
    %v1111 = vtanh.pop %v1110
    %1113 = vrot.lane.b32.xlu0 %v1111, 64
    %v1114 = vpop.permute.xlu0 %1113
    %v1116 = vmul.f32 %v1099, %v1114
    %v1117 = vrot.slane %v1007, 6
    %1118 = vrot.lane.b32.xlu0 %v1117, 32
    %v1119 = vpop.permute.xlu0 %1118
    %v1120 = vsel %vm165, %v1119, 0
    %1122 = vmatprep.subr.mxu0 0.0
    %1123 = vmatpush1.msra.mxu0 %v247
    %1124 = vmatprep.subr.mxu0 0.0
    %1125 = vmatpush1.msra.mxu0 %v248
    %1126 = vmatprep.subr.mxu0 0.0
    %1127 = vmatpush1.msra.mxu0 %v249
    %1128 = vmatprep.subr.mxu0 0.0
    %1129 = vmatpush1.msra.mxu0 %v250
    %1130 = vmatprep.subr.mxu0 0.0
    %1131 = vmatpush1.msra.mxu0 0.0
    %1132 = vmatprep.subr.mxu0 0.0
    %1133 = vmatpush1.msra.mxu0 0.0
    %1134 = vmatprep.subr.mxu0 0.0
    %1135 = vmatpush1.msra.mxu0 0.0
    %1136 = vmatprep.subr.mxu0 0.0
    %1137 = vmatpush1.msra.mxu0 0.0
    %1138 = vmatprep.subr.mxu0 0.0
    %1139 = vmatpush1.msra.mxu0 0.0
    %1140 = vmatprep.subr.mxu0 0.0
    %1141 = vmatpush1.msra.mxu0 0.0
    %1142 = vmatprep.subr.mxu0 0.0
    %1143 = vmatpush1.msra.mxu0 0.0
    %1144 = vmatprep.subr.mxu0 0.0
    %1145 = vmatpush1.msra.mxu0 0.0
    %1146 = vmatprep.subr.mxu0 0.0
    %1147 = vmatpush1.msra.mxu0 0.0
    %1148 = vmatprep.subr.mxu0 0.0
    %1149 = vmatpush1.msra.mxu0 0.0
    %1150 = vmatprep.subr.mxu0 0.0
    %1151 = vmatpush1.msra.mxu0 0.0
    %1152 = vmatprep.subr.mxu0 0.0
    %1153 = vmatpush1.msra.mxu0 0.0
    %1154 = vmatprep.subr.mxu0 0.0
    %1155 = vmatpush1.msra.mxu0 0.0
    %1156 = vmatprep.subr.mxu0 0.0
    %1157 = vmatpush1.msra.mxu0 0.0
    %1158 = vmatprep.subr.mxu0 0.0
    %1159 = vmatpush1.msra.mxu0 0.0
    %1160 = vmatprep.subr.mxu0 0.0
    %1161 = vmatpush1.msra.mxu0 0.0
    %1162 = vmatprep.subr.mxu0 0.0
    %1163 = vmatpush1.msra.mxu0 0.0
    %1164 = vmatprep.subr.mxu0 0.0
    %1165 = vmatpush1.msra.mxu0 0.0
    %1166 = vmatprep.subr.mxu0 0.0
    %1167 = vmatpush1.msra.mxu0 0.0
    %1168 = vmatprep.subr.mxu0 0.0
    %1169 = vmatpush1.msra.mxu0 0.0
    %1170 = vmatprep.subr.mxu0 0.0
    %1171 = vmatpush1.msra.mxu0 0.0
    %1172 = vmatprep.subr.mxu0 0.0
    %1173 = vmatpush1.msra.mxu0 0.0
    %1174 = vmatprep.subr.mxu0 0.0
    %1175 = vmatpush1.msra.mxu0 0.0
    %1176 = vmatprep.subr.mxu0 0.0
    %1177 = vmatpush1.msra.mxu0 0.0
    %1178 = vmatprep.subr.mxu0 0.0
    %1179 = vmatpush1.msra.mxu0 0.0
    %1180 = vmatprep.subr.mxu0 0.0
    %1181 = vmatpush1.msra.mxu0 0.0
    %1182 = vmatprep.subr.mxu0 0.0
    %1183 = vmatpush1.msra.mxu0 0.0
    %1184 = vmatprep.subr.mxu0 0.0
    %1185 = vmatpush1.msra.mxu0 0.0
    %1186 = vmatprep.mubr.f32.mxu0 0.0
    %1187 = vmatmul.mubr.f32.gmra.mrb[0].mxu0 %v1120
    %v1188 = vpop.f32.mrb[0].mxu0
    %v1189 = vadd.f32 0.0, %v1188
    %v1190 = vpop.f32.mrb[0].mxu0
    %1191 = vdwg.mxu0
    %v1192 = vadd.f32 %v244, %v1189
    %v1193 = vtanh.pop %v1192
    %v1194 = vxor.u32 %v1192, 2147483648
    %v1195 = vmul.f32 %v1194, 1.442695
    %v1196 = vpow.pop %v1195
    %v1197 = vadd.f32 %v1196, 1.0
    %v1198 = vrcp.pop %v1197
    %v1199 = vmul.f32 1.0, %v1198
    %v1200 = vsel %vm336, %v1193, %v1199
    %v1202 = vrot.slane %v1001, 6
    %v1204 = vmul.f32 %v1200, %v1202
    %1206 = vrot.lane.b32.xlu0 %v1200, 64
    %v1207 = vpop.permute.xlu0 %1206
    %v1209 = vmul.f32 %v1200, %v1207
    %1211 = vrot.lane.b32.xlu0 %v1209, 32
    %v1212 = vpop.permute.xlu0 %1211
    %v1214 = vadd.f32 %v1204, %v1212
    %v1215 = vtanh.pop %v1214
    %1217 = vrot.lane.b32.xlu0 %v1215, 64
    %v1218 = vpop.permute.xlu0 %1217
    %v1220 = vmul.f32 %v1200, %v1218
    %1222 = vrot.lane.b32.xlu0 %v1220, 32
    %v1223 = vpop.permute.xlu0 %1222
    %1226 = vrot.lane.b32.xlu0 %v1116, 64
    %v1227 = vpop.permute.xlu0 %1226
    %v1229 = vsel %vm165, %v1223, %v1227
    %v1231 = vsel %vm373, %v1229, 0
    %1233 = vmatprep.subr.mxu0 0.0
    %1234 = vmatpush1.msra.mxu0 %v251
    %1235 = vmatprep.subr.mxu0 0.0
    %1236 = vmatpush1.msra.mxu0 %v252
    %1237 = vmatprep.subr.mxu0 0.0
    %1238 = vmatpush1.msra.mxu0 %v253
    %1239 = vmatprep.subr.mxu0 0.0
    %1240 = vmatpush1.msra.mxu0 %v254
    %1241 = vmatprep.subr.mxu0 0.0
    %1242 = vmatpush1.msra.mxu0 %v255
    %1243 = vmatprep.subr.mxu0 0.0
    %1244 = vmatpush1.msra.mxu0 %v256
    %1245 = vmatprep.subr.mxu0 0.0
    %1246 = vmatpush1.msra.mxu0 %v257
    %1247 = vmatprep.subr.mxu0 0.0
    %1248 = vmatpush1.msra.mxu0 %v258
    %1249 = vmatprep.subr.mxu0 0.0
    %1250 = vmatpush1.msra.mxu0 0.0
    %1251 = vmatprep.subr.mxu0 0.0
    %1252 = vmatpush1.msra.mxu0 0.0
    %1253 = vmatprep.subr.mxu0 0.0
    %1254 = vmatpush1.msra.mxu0 0.0
    %1255 = vmatprep.subr.mxu0 0.0
    %1256 = vmatpush1.msra.mxu0 0.0
    %1257 = vmatprep.subr.mxu0 0.0
    %1258 = vmatpush1.msra.mxu0 0.0
    %1259 = vmatprep.subr.mxu0 0.0
    %1260 = vmatpush1.msra.mxu0 0.0
    %1261 = vmatprep.subr.mxu0 0.0
    %1262 = vmatpush1.msra.mxu0 0.0
    %1263 = vmatprep.subr.mxu0 0.0
    %1264 = vmatpush1.msra.mxu0 0.0
    %1265 = vmatprep.subr.mxu0 0.0
    %1266 = vmatpush1.msra.mxu0 0.0
    %1267 = vmatprep.subr.mxu0 0.0
    %1268 = vmatpush1.msra.mxu0 0.0
    %1269 = vmatprep.subr.mxu0 0.0
    %1270 = vmatpush1.msra.mxu0 0.0
    %1271 = vmatprep.subr.mxu0 0.0
    %1272 = vmatpush1.msra.mxu0 0.0
    %1273 = vmatprep.subr.mxu0 0.0
    %1274 = vmatpush1.msra.mxu0 0.0
    %1275 = vmatprep.subr.mxu0 0.0
    %1276 = vmatpush1.msra.mxu0 0.0
    %1277 = vmatprep.subr.mxu0 0.0
    %1278 = vmatpush1.msra.mxu0 0.0
    %1279 = vmatprep.subr.mxu0 0.0
    %1280 = vmatpush1.msra.mxu0 0.0
    %1281 = vmatprep.subr.mxu0 0.0
    %1282 = vmatpush1.msra.mxu0 0.0
    %1283 = vmatprep.subr.mxu0 0.0
    %1284 = vmatpush1.msra.mxu0 0.0
    %1285 = vmatprep.subr.mxu0 0.0
    %1286 = vmatpush1.msra.mxu0 0.0
    %1287 = vmatprep.subr.mxu0 0.0
    %1288 = vmatpush1.msra.mxu0 0.0
    %1289 = vmatprep.subr.mxu0 0.0
    %1290 = vmatpush1.msra.mxu0 0.0
    %1291 = vmatprep.subr.mxu0 0.0
    %1292 = vmatpush1.msra.mxu0 0.0
    %1293 = vmatprep.subr.mxu0 0.0
    %1294 = vmatpush1.msra.mxu0 0.0
    %1295 = vmatprep.subr.mxu0 0.0
    %1296 = vmatpush1.msra.mxu0 0.0
    %1297 = vmatprep.mubr.f32.mxu0 0.0
    %1298 = vmatmul.mubr.f32.gmra.mrb[0].mxu0 %v1231
    %v1299 = vpop.f32.mrb[0].mxu0
    %v1300 = vadd.f32 %v371, %v1299
    %v1301 = vpop.f32.mrb[0].mxu0
    %1302 = vdwg.mxu0
    %v1303 = vtanh.pop %v1300
    %v1304 = vxor.u32 %v1300, 2147483648
    %v1305 = vmul.f32 %v1304, 1.442695
    %v1306 = vpow.pop %v1305
    %v1307 = vadd.f32 %v1306, 1.0
    %v1308 = vrcp.pop %v1307
    %v1309 = vmul.f32 1.0, %v1308
    %v1310 = vsel %vm336, %v1303, %v1309
    %v1311 = vmul.f32 %v1310, %v1110
    %1313 = vrot.lane.b32.xlu0 %v1310, 64
    %v1314 = vpop.permute.xlu0 %1313
    %v1316 = vmul.f32 %v1310, %v1314
    %1318 = vrot.lane.b32.xlu0 %v1316, 32
    %v1319 = vpop.permute.xlu0 %1318
    %v1321 = vadd.f32 %v1311, %v1319
    %v1322 = vtanh.pop %v1321
    %1324 = vrot.lane.b32.xlu0 %v1322, 64
    %v1325 = vpop.permute.xlu0 %1324
    %v1327 = vmul.f32 %v1310, %v1325
    %v1328 = vsel %vm165, %v1223, 0
    %1330 = vmatprep.subr.mxu0 0.0
    %1331 = vmatpush1.msra.mxu0 %v247
    %1332 = vmatprep.subr.mxu0 0.0
    %1333 = vmatpush1.msra.mxu0 %v248
    %1334 = vmatprep.subr.mxu0 0.0
    %1335 = vmatpush1.msra.mxu0 %v249
    %1336 = vmatprep.subr.mxu0 0.0
    %1337 = vmatpush1.msra.mxu0 %v250
    %1338 = vmatprep.subr.mxu0 0.0
    %1339 = vmatpush1.msra.mxu0 0.0
    %1340 = vmatprep.subr.mxu0 0.0
    %1341 = vmatpush1.msra.mxu0 0.0
    %1342 = vmatprep.subr.mxu0 0.0
    %1343 = vmatpush1.msra.mxu0 0.0
    %1344 = vmatprep.subr.mxu0 0.0
    %1345 = vmatpush1.msra.mxu0 0.0
    %1346 = vmatprep.subr.mxu0 0.0
    %1347 = vmatpush1.msra.mxu0 0.0
    %1348 = vmatprep.subr.mxu0 0.0
    %1349 = vmatpush1.msra.mxu0 0.0
    %1350 = vmatprep.subr.mxu0 0.0
    %1351 = vmatpush1.msra.mxu0 0.0
    %1352 = vmatprep.subr.mxu0 0.0
    %1353 = vmatpush1.msra.mxu0 0.0
    %1354 = vmatprep.subr.mxu0 0.0
    %1355 = vmatpush1.msra.mxu0 0.0
    %1356 = vmatprep.subr.mxu0 0.0
    %1357 = vmatpush1.msra.mxu0 0.0
    %1358 = vmatprep.subr.mxu0 0.0
    %1359 = vmatpush1.msra.mxu0 0.0
    %1360 = vmatprep.subr.mxu0 0.0
    %1361 = vmatpush1.msra.mxu0 0.0
    %1362 = vmatprep.subr.mxu0 0.0
    %1363 = vmatpush1.msra.mxu0 0.0
    %1364 = vmatprep.subr.mxu0 0.0
    %1365 = vmatpush1.msra.mxu0 0.0
    %1366 = vmatprep.subr.mxu0 0.0
    %1367 = vmatpush1.msra.mxu0 0.0
    %1368 = vmatprep.subr.mxu0 0.0
    %1369 = vmatpush1.msra.mxu0 0.0
    %1370 = vmatprep.subr.mxu0 0.0
    %1371 = vmatpush1.msra.mxu0 0.0
    %1372 = vmatprep.subr.mxu0 0.0
    %1373 = vmatpush1.msra.mxu0 0.0
    %1374 = vmatprep.subr.mxu0 0.0
    %1375 = vmatpush1.msra.mxu0 0.0
    %1376 = vmatprep.subr.mxu0 0.0
    %1377 = vmatpush1.msra.mxu0 0.0
    %1378 = vmatprep.subr.mxu0 0.0
    %1379 = vmatpush1.msra.mxu0 0.0
    %1380 = vmatprep.subr.mxu0 0.0
    %1381 = vmatpush1.msra.mxu0 0.0
    %1382 = vmatprep.subr.mxu0 0.0
    %1383 = vmatpush1.msra.mxu0 0.0
    %1384 = vmatprep.subr.mxu0 0.0
    %1385 = vmatpush1.msra.mxu0 0.0
    %1386 = vmatprep.subr.mxu0 0.0
    %1387 = vmatpush1.msra.mxu0 0.0
    %1388 = vmatprep.subr.mxu0 0.0
    %1389 = vmatpush1.msra.mxu0 0.0
    %1390 = vmatprep.subr.mxu0 0.0
    %1391 = vmatpush1.msra.mxu0 0.0
    %1392 = vmatprep.subr.mxu0 0.0
    %1393 = vmatpush1.msra.mxu0 0.0
    %1394 = vmatprep.mubr.f32.mxu0 0.0
    %1395 = vmatmul.mubr.f32.gmra.mrb[0].mxu0 %v1328
    %v1396 = vpop.f32.mrb[0].mxu0
    %v1397 = vadd.f32 0.0, %v1396
    %v1398 = vpop.f32.mrb[0].mxu0
    %1399 = vdwg.mxu0
    %v1401 = vrot.slane %v1397, 6
    %v1403 = vadd.f32 %v244, %v1401
    %v1404 = vtanh.pop %v1403
    %v1405 = vxor.u32 %v1403, 2147483648
    %v1406 = vmul.f32 %v1405, 1.442695
    %v1407 = vpow.pop %v1406
    %v1408 = vadd.f32 %v1407, 1.0
    %v1409 = vrcp.pop %v1408
    %v1410 = vmul.f32 1.0, %v1409
    %v1411 = vsel %vm336, %v1404, %v1410
    %v1413 = vrot.slane %v1214, 6
    %v1415 = vmul.f32 %v1411, %v1413
    %1417 = vrot.lane.b32.xlu0 %v1411, 64
    %v1418 = vpop.permute.xlu0 %1417
    %v1420 = vmul.f32 %v1411, %v1418
    %1422 = vrot.lane.b32.xlu0 %v1420, 32
    %v1423 = vpop.permute.xlu0 %1422
    %v1425 = vadd.f32 %v1415, %v1423
    %v1426 = vtanh.pop %v1425
    %1428 = vrot.lane.b32.xlu0 %v1426, 64
    %v1429 = vpop.permute.xlu0 %1428
    %v1431 = vmul.f32 %v1411, %v1429
    %1433 = vrot.lane.b32.xlu0 %v1431, 32
    %v1434 = vpop.permute.xlu0 %1433
    %v1437 = vrot.slane %v1327, 6
    %1438 = vrot.lane.b32.xlu0 %v1437, 64
    %v1439 = vpop.permute.xlu0 %1438
    %v1441 = vsel %vm165, %v1434, %v1439
    %v1443 = vrot.slane %v1441, 2
    %v1444 = vsel %vm373, %v1443, 0
    %1446 = vmatprep.subr.mxu0 0.0
    %1447 = vmatpush1.msra.mxu0 %v251
    %1448 = vmatprep.subr.mxu0 0.0
    %1449 = vmatpush1.msra.mxu0 %v252
    %1450 = vmatprep.subr.mxu0 0.0
    %1451 = vmatpush1.msra.mxu0 %v253
    %1452 = vmatprep.subr.mxu0 0.0
    %1453 = vmatpush1.msra.mxu0 %v254
    %1454 = vmatprep.subr.mxu0 0.0
    %1455 = vmatpush1.msra.mxu0 %v255
    %1456 = vmatprep.subr.mxu0 0.0
    %1457 = vmatpush1.msra.mxu0 %v256
    %1458 = vmatprep.subr.mxu0 0.0
    %1459 = vmatpush1.msra.mxu0 %v257
    %1460 = vmatprep.subr.mxu0 0.0
    %1461 = vmatpush1.msra.mxu0 %v258
    %1462 = vmatprep.subr.mxu0 0.0
    %1463 = vmatpush1.msra.mxu0 0.0
    %1464 = vmatprep.subr.mxu0 0.0
    %1465 = vmatpush1.msra.mxu0 0.0
    %1466 = vmatprep.subr.mxu0 0.0
    %1467 = vmatpush1.msra.mxu0 0.0
    %1468 = vmatprep.subr.mxu0 0.0
    %1469 = vmatpush1.msra.mxu0 0.0
    %1470 = vmatprep.subr.mxu0 0.0
    %1471 = vmatpush1.msra.mxu0 0.0
    %1472 = vmatprep.subr.mxu0 0.0
    %1473 = vmatpush1.msra.mxu0 0.0
    %1474 = vmatprep.subr.mxu0 0.0
    %1475 = vmatpush1.msra.mxu0 0.0
    %1476 = vmatprep.subr.mxu0 0.0
    %1477 = vmatpush1.msra.mxu0 0.0
    %1478 = vmatprep.subr.mxu0 0.0
    %1479 = vmatpush1.msra.mxu0 0.0
    %1480 = vmatprep.subr.mxu0 0.0
    %1481 = vmatpush1.msra.mxu0 0.0
    %1482 = vmatprep.subr.mxu0 0.0
    %1483 = vmatpush1.msra.mxu0 0.0
    %1484 = vmatprep.subr.mxu0 0.0
    %1485 = vmatpush1.msra.mxu0 0.0
    %1486 = vmatprep.subr.mxu0 0.0
    %1487 = vmatpush1.msra.mxu0 0.0
    %1488 = vmatprep.subr.mxu0 0.0
    %1489 = vmatpush1.msra.mxu0 0.0
    %1490 = vmatprep.subr.mxu0 0.0
    %1491 = vmatpush1.msra.mxu0 0.0
    %1492 = vmatprep.subr.mxu0 0.0
    %1493 = vmatpush1.msra.mxu0 0.0
    %1494 = vmatprep.subr.mxu0 0.0
    %1495 = vmatpush1.msra.mxu0 0.0
    %1496 = vmatprep.subr.mxu0 0.0
    %1497 = vmatpush1.msra.mxu0 0.0
    %1498 = vmatprep.subr.mxu0 0.0
    %1499 = vmatpush1.msra.mxu0 0.0
    %1500 = vmatprep.subr.mxu0 0.0
    %1501 = vmatpush1.msra.mxu0 0.0
    %1502 = vmatprep.subr.mxu0 0.0
    %1503 = vmatpush1.msra.mxu0 0.0
    %1504 = vmatprep.subr.mxu0 0.0
    %1505 = vmatpush1.msra.mxu0 0.0
    %1506 = vmatprep.subr.mxu0 0.0
    %1507 = vmatpush1.msra.mxu0 0.0
    %1508 = vmatprep.subr.mxu0 0.0
    %1509 = vmatpush1.msra.mxu0 0.0
    %1510 = vmatprep.mubr.f32.mxu0 0.0
    %1511 = vmatmul.mubr.f32.gmra.mrb[0].mxu0 %v1444
    %v1512 = vpop.f32.mrb[0].mxu0
    %v1513 = vadd.f32 %v371, %v1512
    %v1514 = vpop.f32.mrb[0].mxu0
    %1515 = vdwg.mxu0
    %v1516 = vtanh.pop %v1513
    %v1517 = vxor.u32 %v1513, 2147483648
    %v1518 = vmul.f32 %v1517, 1.442695
    %v1519 = vpow.pop %v1518
    %v1520 = vadd.f32 %v1519, 1.0
    %v1521 = vrcp.pop %v1520
    %v1522 = vmul.f32 1.0, %v1521
    %v1523 = vsel %vm336, %v1516, %v1522
    %v1524 = vmul.f32 %v1523, %v1321
    %1526 = vrot.lane.b32.xlu0 %v1523, 64
    %v1527 = vpop.permute.xlu0 %1526
    %v1529 = vmul.f32 %v1523, %v1527
    %1531 = vrot.lane.b32.xlu0 %v1529, 32
    %v1532 = vpop.permute.xlu0 %1531
    %v1534 = vadd.f32 %v1524, %v1532
    %v1535 = vtanh.pop %v1534
    %1537 = vrot.lane.b32.xlu0 %v1535, 64
    %v1538 = vpop.permute.xlu0 %1537
    %v1540 = vmul.f32 %v1523, %v1538
    %v1541 = vrot.slane %v1431, 2
    %1542 = vrot.lane.b32.xlu0 %v1541, 32
    %v1543 = vpop.permute.xlu0 %1542
    %v1544 = vsel %vm165, %v1543, 0
    %1546 = vmatprep.subr.mxu0 0.0
    %1547 = vmatpush1.msra.mxu0 %v247
    %1548 = vmatprep.subr.mxu0 0.0
    %1549 = vmatpush1.msra.mxu0 %v248
    %1550 = vmatprep.subr.mxu0 0.0
    %1551 = vmatpush1.msra.mxu0 %v249
    %1552 = vmatprep.subr.mxu0 0.0
    %1553 = vmatpush1.msra.mxu0 %v250
    %1554 = vmatprep.subr.mxu0 0.0
    %1555 = vmatpush1.msra.mxu0 0.0
    %1556 = vmatprep.subr.mxu0 0.0
    %1557 = vmatpush1.msra.mxu0 0.0
    %1558 = vmatprep.subr.mxu0 0.0
    %1559 = vmatpush1.msra.mxu0 0.0
    %1560 = vmatprep.subr.mxu0 0.0
    %1561 = vmatpush1.msra.mxu0 0.0
    %1562 = vmatprep.subr.mxu0 0.0
    %1563 = vmatpush1.msra.mxu0 0.0
    %1564 = vmatprep.subr.mxu0 0.0
    %1565 = vmatpush1.msra.mxu0 0.0
    %1566 = vmatprep.subr.mxu0 0.0
    %1567 = vmatpush1.msra.mxu0 0.0
    %1568 = vmatprep.subr.mxu0 0.0
    %1569 = vmatpush1.msra.mxu0 0.0
    %1570 = vmatprep.subr.mxu0 0.0
    %1571 = vmatpush1.msra.mxu0 0.0
    %1572 = vmatprep.subr.mxu0 0.0
    %1573 = vmatpush1.msra.mxu0 0.0
    %1574 = vmatprep.subr.mxu0 0.0
    %1575 = vmatpush1.msra.mxu0 0.0
    %1576 = vmatprep.subr.mxu0 0.0
    %1577 = vmatpush1.msra.mxu0 0.0
    %1578 = vmatprep.subr.mxu0 0.0
    %1579 = vmatpush1.msra.mxu0 0.0
    %1580 = vmatprep.subr.mxu0 0.0
    %1581 = vmatpush1.msra.mxu0 0.0
    %1582 = vmatprep.subr.mxu0 0.0
    %1583 = vmatpush1.msra.mxu0 0.0
    %1584 = vmatprep.subr.mxu0 0.0
    %1585 = vmatpush1.msra.mxu0 0.0
    %1586 = vmatprep.subr.mxu0 0.0
    %1587 = vmatpush1.msra.mxu0 0.0
    %1588 = vmatprep.subr.mxu0 0.0
    %1589 = vmatpush1.msra.mxu0 0.0
    %1590 = vmatprep.subr.mxu0 0.0
    %1591 = vmatpush1.msra.mxu0 0.0
    %1592 = vmatprep.subr.mxu0 0.0
    %1593 = vmatpush1.msra.mxu0 0.0
    %1594 = vmatprep.subr.mxu0 0.0
    %1595 = vmatpush1.msra.mxu0 0.0
    %1596 = vmatprep.subr.mxu0 0.0
    %1597 = vmatpush1.msra.mxu0 0.0
    %1598 = vmatprep.subr.mxu0 0.0
    %1599 = vmatpush1.msra.mxu0 0.0
    %1600 = vmatprep.subr.mxu0 0.0
    %1601 = vmatpush1.msra.mxu0 0.0
    %1602 = vmatprep.subr.mxu0 0.0
    %1603 = vmatpush1.msra.mxu0 0.0
    %1604 = vmatprep.subr.mxu0 0.0
    %1605 = vmatpush1.msra.mxu0 0.0
    %1606 = vmatprep.subr.mxu0 0.0
    %1607 = vmatpush1.msra.mxu0 0.0
    %1608 = vmatprep.subr.mxu0 0.0
    %1609 = vmatpush1.msra.mxu0 0.0
    %1610 = vmatprep.mubr.f32.mxu0 0.0
    %1611 = vmatmul.mubr.f32.gmra.mrb[0].mxu0 %v1544
    %v1612 = vpop.f32.mrb[0].mxu0
    %v1613 = vadd.f32 0.0, %v1612
    %v1614 = vpop.f32.mrb[0].mxu0
    %1615 = vdwg.mxu0
    %v1617 = vrot.slane %v1613, 4
    %v1619 = vadd.f32 %v244, %v1617
    %v1620 = vtanh.pop %v1619
    %v1621 = vxor.u32 %v1619, 2147483648
    %v1622 = vmul.f32 %v1621, 1.442695
    %v1623 = vpow.pop %v1622
    %v1624 = vadd.f32 %v1623, 1.0
    %v1625 = vrcp.pop %v1624
    %v1626 = vmul.f32 1.0, %v1625
    %v1627 = vsel %vm336, %v1620, %v1626
    %v1629 = vrot.slane %v1425, 6
    %v1631 = vmul.f32 %v1627, %v1629
    %1633 = vrot.lane.b32.xlu0 %v1627, 64
    %v1634 = vpop.permute.xlu0 %1633
    %v1636 = vmul.f32 %v1627, %v1634
    %1638 = vrot.lane.b32.xlu0 %v1636, 32
    %v1639 = vpop.permute.xlu0 %1638
    %v1641 = vadd.f32 %v1631, %v1639
    %v1642 = vtanh.pop %v1641
    %1644 = vrot.lane.b32.xlu0 %v1642, 64
    %v1645 = vpop.permute.xlu0 %1644
    %v1647 = vmul.f32 %v1627, %v1645
    %1649 = vrot.lane.b32.xlu0 %v1647, 32
    %v1650 = vpop.permute.xlu0 %1649
    %v1653 = vrot.slane %v1540, 4
    %1654 = vrot.lane.b32.xlu0 %v1653, 64
    %v1655 = vpop.permute.xlu0 %1654
    %v1657 = vsel %vm165, %v1650, %v1655
    %v1659 = vrot.slane %v1657, 4
    %v1660 = vsel %vm373, %v1659, 0
    %1662 = vmatprep.subr.mxu0 0.0
    %1663 = vmatpush1.msra.mxu0 %v251
    %1664 = vmatprep.subr.mxu0 0.0
    %1665 = vmatpush1.msra.mxu0 %v252
    %1666 = vmatprep.subr.mxu0 0.0
    %1667 = vmatpush1.msra.mxu0 %v253
    %1668 = vmatprep.subr.mxu0 0.0
    %1669 = vmatpush1.msra.mxu0 %v254
    %1670 = vmatprep.subr.mxu0 0.0
    %1671 = vmatpush1.msra.mxu0 %v255
    %1672 = vmatprep.subr.mxu0 0.0
    %1673 = vmatpush1.msra.mxu0 %v256
    %1674 = vmatprep.subr.mxu0 0.0
    %1675 = vmatpush1.msra.mxu0 %v257
    %1676 = vmatprep.subr.mxu0 0.0
    %1677 = vmatpush1.msra.mxu0 %v258
    %1678 = vmatprep.subr.mxu0 0.0
    %1679 = vmatpush1.msra.mxu0 0.0
    %1680 = vmatprep.subr.mxu0 0.0
    %1681 = vmatpush1.msra.mxu0 0.0
    %1682 = vmatprep.subr.mxu0 0.0
    %1683 = vmatpush1.msra.mxu0 0.0
    %1684 = vmatprep.subr.mxu0 0.0
    %1685 = vmatpush1.msra.mxu0 0.0
    %1686 = vmatprep.subr.mxu0 0.0
    %1687 = vmatpush1.msra.mxu0 0.0
    %1688 = vmatprep.subr.mxu0 0.0
    %1689 = vmatpush1.msra.mxu0 0.0
    %1690 = vmatprep.subr.mxu0 0.0
    %1691 = vmatpush1.msra.mxu0 0.0
    %1692 = vmatprep.subr.mxu0 0.0
    %1693 = vmatpush1.msra.mxu0 0.0
    %1694 = vmatprep.subr.mxu0 0.0
    %1695 = vmatpush1.msra.mxu0 0.0
    %1696 = vmatprep.subr.mxu0 0.0
    %1697 = vmatpush1.msra.mxu0 0.0
    %1698 = vmatprep.subr.mxu0 0.0
    %1699 = vmatpush1.msra.mxu0 0.0
    %1700 = vmatprep.subr.mxu0 0.0
    %1701 = vmatpush1.msra.mxu0 0.0
    %1702 = vmatprep.subr.mxu0 0.0
    %1703 = vmatpush1.msra.mxu0 0.0
    %1704 = vmatprep.subr.mxu0 0.0
    %1705 = vmatpush1.msra.mxu0 0.0
    %1706 = vmatprep.subr.mxu0 0.0
    %1707 = vmatpush1.msra.mxu0 0.0
    %1708 = vmatprep.subr.mxu0 0.0
    %1709 = vmatpush1.msra.mxu0 0.0
    %1710 = vmatprep.subr.mxu0 0.0
    %1711 = vmatpush1.msra.mxu0 0.0
    %1712 = vmatprep.subr.mxu0 0.0
    %1713 = vmatpush1.msra.mxu0 0.0
    %1714 = vmatprep.subr.mxu0 0.0
    %1715 = vmatpush1.msra.mxu0 0.0
    %1716 = vmatprep.subr.mxu0 0.0
    %1717 = vmatpush1.msra.mxu0 0.0
    %1718 = vmatprep.subr.mxu0 0.0
    %1719 = vmatpush1.msra.mxu0 0.0
    %1720 = vmatprep.subr.mxu0 0.0
    %1721 = vmatpush1.msra.mxu0 0.0
    %1722 = vmatprep.subr.mxu0 0.0
    %1723 = vmatpush1.msra.mxu0 0.0
    %1724 = vmatprep.subr.mxu0 0.0
    %1725 = vmatpush1.msra.mxu0 0.0
    %1726 = vmatprep.mubr.f32.mxu0 0.0
    %1727 = vmatmul.mubr.f32.gmra.mrb[0].mxu0 %v1660
    %v1728 = vpop.f32.mrb[0].mxu0
    %v1729 = vadd.f32 %v371, %v1728
    %v1730 = vpop.f32.mrb[0].mxu0
    %1731 = vdwg.mxu0
    %v1732 = vtanh.pop %v1729
    %v1733 = vxor.u32 %v1729, 2147483648
    %v1734 = vmul.f32 %v1733, 1.442695
    %v1735 = vpow.pop %v1734
    %v1736 = vadd.f32 %v1735, 1.0
    %v1737 = vrcp.pop %v1736
    %v1738 = vmul.f32 1.0, %v1737
    %v1739 = vsel %vm336, %v1732, %v1738
    %v1740 = vmul.f32 %v1739, %v1534
    %1742 = vrot.lane.b32.xlu0 %v1739, 64
    %v1743 = vpop.permute.xlu0 %1742
    %v1745 = vmul.f32 %v1739, %v1743
    %1747 = vrot.lane.b32.xlu0 %v1745, 32
    %v1748 = vpop.permute.xlu0 %1747
    %v1750 = vadd.f32 %v1740, %v1748
    %v1751 = vtanh.pop %v1750
    %1753 = vrot.lane.b32.xlu0 %v1751, 64
    %v1754 = vpop.permute.xlu0 %1753
    %v1756 = vmul.f32 %v1739, %v1754
    %v1757 = vrot.slane %v1647, 4
    %1758 = vrot.lane.b32.xlu0 %v1757, 32
    %v1759 = vpop.permute.xlu0 %1758
    %v1760 = vsel %vm165, %v1759, 0
    %1762 = vmatprep.subr.mxu0 0.0
    %1763 = vmatpush1.msra.mxu0 %v247
    %1764 = vmatprep.subr.mxu0 0.0
    %1765 = vmatpush1.msra.mxu0 %v248
    %1766 = vmatprep.subr.mxu0 0.0
    %1767 = vmatpush1.msra.mxu0 %v249
    %1768 = vmatprep.subr.mxu0 0.0
    %1769 = vmatpush1.msra.mxu0 %v250
    %1770 = vmatprep.subr.mxu0 0.0
    %1771 = vmatpush1.msra.mxu0 0.0
    %1772 = vmatprep.subr.mxu0 0.0
    %1773 = vmatpush1.msra.mxu0 0.0
    %1774 = vmatprep.subr.mxu0 0.0
    %1775 = vmatpush1.msra.mxu0 0.0
    %1776 = vmatprep.subr.mxu0 0.0
    %1777 = vmatpush1.msra.mxu0 0.0
    %1778 = vmatprep.subr.mxu0 0.0
    %1779 = vmatpush1.msra.mxu0 0.0
    %1780 = vmatprep.subr.mxu0 0.0
    %1781 = vmatpush1.msra.mxu0 0.0
    %1782 = vmatprep.subr.mxu0 0.0
    %1783 = vmatpush1.msra.mxu0 0.0
    %1784 = vmatprep.subr.mxu0 0.0
    %1785 = vmatpush1.msra.mxu0 0.0
    %1786 = vmatprep.subr.mxu0 0.0
    %1787 = vmatpush1.msra.mxu0 0.0
    %1788 = vmatprep.subr.mxu0 0.0
    %1789 = vmatpush1.msra.mxu0 0.0
    %1790 = vmatprep.subr.mxu0 0.0
    %1791 = vmatpush1.msra.mxu0 0.0
    %1792 = vmatprep.subr.mxu0 0.0
    %1793 = vmatpush1.msra.mxu0 0.0
    %1794 = vmatprep.subr.mxu0 0.0
    %1795 = vmatpush1.msra.mxu0 0.0
    %1796 = vmatprep.subr.mxu0 0.0
    %1797 = vmatpush1.msra.mxu0 0.0
    %1798 = vmatprep.subr.mxu0 0.0
    %1799 = vmatpush1.msra.mxu0 0.0
    %1800 = vmatprep.subr.mxu0 0.0
    %1801 = vmatpush1.msra.mxu0 0.0
    %1802 = vmatprep.subr.mxu0 0.0
    %1803 = vmatpush1.msra.mxu0 0.0
    %1804 = vmatprep.subr.mxu0 0.0
    %1805 = vmatpush1.msra.mxu0 0.0
    %1806 = vmatprep.subr.mxu0 0.0
    %1807 = vmatpush1.msra.mxu0 0.0
    %1808 = vmatprep.subr.mxu0 0.0
    %1809 = vmatpush1.msra.mxu0 0.0
    %1810 = vmatprep.subr.mxu0 0.0
    %1811 = vmatpush1.msra.mxu0 0.0
    %1812 = vmatprep.subr.mxu0 0.0
    %1813 = vmatpush1.msra.mxu0 0.0
    %1814 = vmatprep.subr.mxu0 0.0
    %1815 = vmatpush1.msra.mxu0 0.0
    %1816 = vmatprep.subr.mxu0 0.0
    %1817 = vmatpush1.msra.mxu0 0.0
    %1818 = vmatprep.subr.mxu0 0.0
    %1819 = vmatpush1.msra.mxu0 0.0
    %1820 = vmatprep.subr.mxu0 0.0
    %1821 = vmatpush1.msra.mxu0 0.0
    %1822 = vmatprep.subr.mxu0 0.0
    %1823 = vmatpush1.msra.mxu0 0.0
    %1824 = vmatprep.subr.mxu0 0.0
    %1825 = vmatpush1.msra.mxu0 0.0
    %1826 = vmatprep.mubr.f32.mxu0 0.0
    %1827 = vmatmul.mubr.f32.gmra.mrb[0].mxu0 %v1760
    %v1828 = vpop.f32.mrb[0].mxu0
    %v1829 = vadd.f32 0.0, %v1828
    %v1830 = vpop.f32.mrb[0].mxu0
    %1831 = vdwg.mxu0
    %v1833 = vrot.slane %v1829, 2
    %v1835 = vadd.f32 %v244, %v1833
    %v1836 = vtanh.pop %v1835
    %v1837 = vxor.u32 %v1835, 2147483648
    %v1838 = vmul.f32 %v1837, 1.442695
    %v1839 = vpow.pop %v1838
    %v1840 = vadd.f32 %v1839, 1.0
    %v1841 = vrcp.pop %v1840
    %v1842 = vmul.f32 1.0, %v1841
    %v1843 = vsel %vm336, %v1836, %v1842
    %v1845 = vrot.slane %v1641, 6
    %v1847 = vmul.f32 %v1843, %v1845
    %1849 = vrot.lane.b32.xlu0 %v1843, 64
    %v1850 = vpop.permute.xlu0 %1849
    %v1852 = vmul.f32 %v1843, %v1850
    %1854 = vrot.lane.b32.xlu0 %v1852, 32
    %v1855 = vpop.permute.xlu0 %1854
    %v1857 = vadd.f32 %v1847, %v1855
    %v1858 = vtanh.pop %v1857
    %1860 = vrot.lane.b32.xlu0 %v1858, 64
    %v1861 = vpop.permute.xlu0 %1860
    %v1863 = vmul.f32 %v1843, %v1861
    %1865 = vrot.lane.b32.xlu0 %v1863, 32
    %v1866 = vpop.permute.xlu0 %1865
    %v1869 = vrot.slane %v1756, 2
    %1870 = vrot.lane.b32.xlu0 %v1869, 64
    %v1871 = vpop.permute.xlu0 %1870
    %v1873 = vsel %vm165, %v1866, %v1871
    %v1875 = vrot.slane %v1873, 6
    %v1876 = vsel %vm373, %v1875, 0
    %1878 = vmatprep.subr.mxu0 0.0
    %1879 = vmatpush1.msra.mxu0 %v251
    %1880 = vmatprep.subr.mxu0 0.0
    %1881 = vmatpush1.msra.mxu0 %v252
    %1882 = vmatprep.subr.mxu0 0.0
    %1883 = vmatpush1.msra.mxu0 %v253
    %1884 = vmatprep.subr.mxu0 0.0
    %1885 = vmatpush1.msra.mxu0 %v254
    %1886 = vmatprep.subr.mxu0 0.0
    %1887 = vmatpush1.msra.mxu0 %v255
    %1888 = vmatprep.subr.mxu0 0.0
    %1889 = vmatpush1.msra.mxu0 %v256
    %1890 = vmatprep.subr.mxu0 0.0
    %1891 = vmatpush1.msra.mxu0 %v257
    %1892 = vmatprep.subr.mxu0 0.0
    %1893 = vmatpush1.msra.mxu0 %v258
    %1894 = vmatprep.subr.mxu0 0.0
    %1895 = vmatpush1.msra.mxu0 0.0
    %1896 = vmatprep.subr.mxu0 0.0
    %1897 = vmatpush1.msra.mxu0 0.0
    %1898 = vmatprep.subr.mxu0 0.0
    %1899 = vmatpush1.msra.mxu0 0.0
    %1900 = vmatprep.subr.mxu0 0.0
    %1901 = vmatpush1.msra.mxu0 0.0
    %1902 = vmatprep.subr.mxu0 0.0
    %1903 = vmatpush1.msra.mxu0 0.0
    %1904 = vmatprep.subr.mxu0 0.0
    %1905 = vmatpush1.msra.mxu0 0.0
    %1906 = vmatprep.subr.mxu0 0.0
    %1907 = vmatpush1.msra.mxu0 0.0
    %1908 = vmatprep.subr.mxu0 0.0
    %1909 = vmatpush1.msra.mxu0 0.0
    %1910 = vmatprep.subr.mxu0 0.0
    %1911 = vmatpush1.msra.mxu0 0.0
    %1912 = vmatprep.subr.mxu0 0.0
    %1913 = vmatpush1.msra.mxu0 0.0
    %1914 = vmatprep.subr.mxu0 0.0
    %1915 = vmatpush1.msra.mxu0 0.0
    %1916 = vmatprep.subr.mxu0 0.0
    %1917 = vmatpush1.msra.mxu0 0.0
    %1918 = vmatprep.subr.mxu0 0.0
    %1919 = vmatpush1.msra.mxu0 0.0
    %1920 = vmatprep.subr.mxu0 0.0
    %1921 = vmatpush1.msra.mxu0 0.0
    %1922 = vmatprep.subr.mxu0 0.0
    %1923 = vmatpush1.msra.mxu0 0.0
    %1924 = vmatprep.subr.mxu0 0.0
    %1925 = vmatpush1.msra.mxu0 0.0
    %1926 = vmatprep.subr.mxu0 0.0
    %1927 = vmatpush1.msra.mxu0 0.0
    %1928 = vmatprep.subr.mxu0 0.0
    %1929 = vmatpush1.msra.mxu0 0.0
    %1930 = vmatprep.subr.mxu0 0.0
    %1931 = vmatpush1.msra.mxu0 0.0
    %1932 = vmatprep.subr.mxu0 0.0
    %1933 = vmatpush1.msra.mxu0 0.0
    %1934 = vmatprep.subr.mxu0 0.0
    %1935 = vmatpush1.msra.mxu0 0.0
    %1936 = vmatprep.subr.mxu0 0.0
    %1937 = vmatpush1.msra.mxu0 0.0
    %1938 = vmatprep.subr.mxu0 0.0
    %1939 = vmatpush1.msra.mxu0 0.0
    %1940 = vmatprep.subr.mxu0 0.0
    %1941 = vmatpush1.msra.mxu0 0.0
    %1942 = vmatprep.mubr.f32.mxu0 0.0
    %1943 = vmatmul.mubr.f32.gmra.mrb[0].mxu0 %v1876
    %v1944 = vpop.f32.mrb[0].mxu0
    %v1945 = vadd.f32 %v371, %v1944
    %v1946 = vpop.f32.mrb[0].mxu0
    %1947 = vdwg.mxu0
    %v1948 = vtanh.pop %v1945
    %v1949 = vxor.u32 %v1945, 2147483648
    %v1950 = vmul.f32 %v1949, 1.442695
    %v1951 = vpow.pop %v1950
    %v1952 = vadd.f32 %v1951, 1.0
    %v1953 = vrcp.pop %v1952
    %v1954 = vmul.f32 1.0, %v1953
    %v1955 = vsel %vm336, %v1948, %v1954
    %v1956 = vmul.f32 %v1955, %v1750
    %1958 = vrot.lane.b32.xlu0 %v1955, 64
    %v1959 = vpop.permute.xlu0 %1958
    %v1961 = vmul.f32 %v1955, %v1959
    %1963 = vrot.lane.b32.xlu0 %v1961, 32
    %v1964 = vpop.permute.xlu0 %1963
    %v1966 = vadd.f32 %v1956, %v1964
    %v1967 = vtanh.pop %v1966
    %1969 = vrot.lane.b32.xlu0 %v1967, 64
    %v1970 = vpop.permute.xlu0 %1969
    %v1972 = vmul.f32 %v1955, %v1970
    %v1973 = vld [vmem:[%s7] sm:$0xff]
    %v1974 = vld [vmem:[%s7 + $0x8] sm:$0xff]
    %v1975 = vld [vmem:[%s7 + $0x10] sm:$0xff]
    %v1976 = vld [vmem:[%s7 + $0x18] sm:$0xff]
    %v1977 = vld [vmem:[%s8] sm:$0x1]
    %v1979 = vlaneseq
    %v1980 = vshrl.u32 %v1979, 7
    %v1981 = vsub.s32 0, %v1980
    %v1982 = vrot.slane %v1977, %v1981
    %1985 = vrot.lane.b32.xlu0 %v1972, 32
    %v1986 = vpop.permute.xlu0 %1985
    %v1987 = vsel %vm165, %v1986, 0
    %1989 = vmatprep.subr.mxu0 0.0
    %1990 = vmatpush1.msra.mxu0 %v1973
    %1991 = vmatprep.subr.mxu0 0.0
    %1992 = vmatpush1.msra.mxu0 %v1974
    %1993 = vmatprep.subr.mxu0 0.0
    %1994 = vmatpush1.msra.mxu0 %v1975
    %1995 = vmatprep.subr.mxu0 0.0
    %1996 = vmatpush1.msra.mxu0 %v1976
    %1997 = vmatprep.subr.mxu0 0.0
    %1998 = vmatpush1.msra.mxu0 0.0
    %1999 = vmatprep.subr.mxu0 0.0
    %2000 = vmatpush1.msra.mxu0 0.0
    %2001 = vmatprep.subr.mxu0 0.0
    %2002 = vmatpush1.msra.mxu0 0.0
    %2003 = vmatprep.subr.mxu0 0.0
    %2004 = vmatpush1.msra.mxu0 0.0
    %2005 = vmatprep.subr.mxu0 0.0
    %2006 = vmatpush1.msra.mxu0 0.0
    %2007 = vmatprep.subr.mxu0 0.0
    %2008 = vmatpush1.msra.mxu0 0.0
    %2009 = vmatprep.subr.mxu0 0.0
    %2010 = vmatpush1.msra.mxu0 0.0
    %2011 = vmatprep.subr.mxu0 0.0
    %2012 = vmatpush1.msra.mxu0 0.0
    %2013 = vmatprep.subr.mxu0 0.0
    %2014 = vmatpush1.msra.mxu0 0.0
    %2015 = vmatprep.subr.mxu0 0.0
    %2016 = vmatpush1.msra.mxu0 0.0
    %2017 = vmatprep.subr.mxu0 0.0
    %2018 = vmatpush1.msra.mxu0 0.0
    %2019 = vmatprep.subr.mxu0 0.0
    %2020 = vmatpush1.msra.mxu0 0.0
    %2021 = vmatprep.subr.mxu0 0.0
    %2022 = vmatpush1.msra.mxu0 0.0
    %2023 = vmatprep.subr.mxu0 0.0
    %2024 = vmatpush1.msra.mxu0 0.0
    %2025 = vmatprep.subr.mxu0 0.0
    %2026 = vmatpush1.msra.mxu0 0.0
    %2027 = vmatprep.subr.mxu0 0.0
    %2028 = vmatpush1.msra.mxu0 0.0
    %2029 = vmatprep.subr.mxu0 0.0
    %2030 = vmatpush1.msra.mxu0 0.0
    %2031 = vmatprep.subr.mxu0 0.0
    %2032 = vmatpush1.msra.mxu0 0.0
    %2033 = vmatprep.subr.mxu0 0.0
    %2034 = vmatpush1.msra.mxu0 0.0
    %2035 = vmatprep.subr.mxu0 0.0
    %2036 = vmatpush1.msra.mxu0 0.0
    %2037 = vmatprep.subr.mxu0 0.0
    %2038 = vmatpush1.msra.mxu0 0.0
    %2039 = vmatprep.subr.mxu0 0.0
    %2040 = vmatpush1.msra.mxu0 0.0
    %2041 = vmatprep.subr.mxu0 0.0
    %2042 = vmatpush1.msra.mxu0 0.0
    %2043 = vmatprep.subr.mxu0 0.0
    %2044 = vmatpush1.msra.mxu0 0.0
    %2045 = vmatprep.subr.mxu0 0.0
    %2046 = vmatpush1.msra.mxu0 0.0
    %2047 = vmatprep.subr.mxu0 0.0
    %2048 = vmatpush1.msra.mxu0 0.0
    %2049 = vmatprep.subr.mxu0 0.0
    %2050 = vmatpush1.msra.mxu0 0.0
    %2051 = vmatprep.subr.mxu0 0.0
    %2052 = vmatpush1.msra.mxu0 0.0
    %2053 = vmatprep.mubr.f32.mxu0 0.0
    %2054 = vmatmul.mubr.f32.gmra.mrb[0].mxu0 %v1987
    %v2055 = vpop.f32.mrb[0].mxu0
    %v2056 = vadd.f32 %v1982, %v2055
    %v2057 = vpop.f32.mrb[0].mxu0
    %2058 = vdwg.mxu0
    %vm2059 = vcmask 17408
    %2060 = vst.msk [vmem:[#allocation5] sm:$0x3] %vm2059, %v2056
    // Predicated region
    $region42: #{tpu_custom_call.1} parent=1 // pred_check
      _
    $region43: #{tpu_custom_call.1} parent=1 // pred_check_branch
      %2062 = sbr.rel (0) target = $region45
    $region44: #{tpu_custom_call.1} parent=1 // pred_region
      %s2064 = ssub.s32 32, 32
      %2065 = vsyncadd [#allocation4], %s2064
      %s2067 = sshll.u32 [#allocation5], 4
      %s2068 = int_to_ptr.vmem [resolvable:$true] %s2067
      %2070 = dma.vmem_to_hbm [thread:$0]  %s2068, 32, %s9, [#allocation4]
    $region45: #{tpu_custom_call.1} parent=1 // pred_fallthru
      _
    // Predicated region
    $region46: #{tpu_custom_call.1} parent=1 // pred_check
      _
    $region47: #{tpu_custom_call.1} parent=1 // pred_check_branch
      %2072 = sbr.rel (0) target = $region49
    $region48: #{tpu_custom_call.1} parent=1 // pred_region
      %2073 = dma.done [#allocation4], 32
    $region49: #{tpu_custom_call.1} parent=1 // pred_fallthru
      _
    %2074 = vsyncpa [#allocation3], 1
    %2075 = vsyncpa [#allocation4], 1

</llo_original>
